<compile_context>
chip_gen: v5e
topology: v5e:2x2
jax: 0.10.0
libtpu: 0.0.40
codegen_flags: <defaults>
</compile_context>

<pallas_src>
import functools

import numpy as np
import jax
import jax.numpy as jnp
from jax.experimental import pallas as pl
from jax.experimental.pallas import tpu as pltpu

EMBED = 128          # embed_size (fixed in the PyTorch module)
HIDDEN = 256         # hidden_size
LAMBDA = 0.01        # sparsity_threshold (softshrink lambda)
LEAKY_SLOPE = 0.01   # nn.LeakyReLU default negative_slope
HIGHEST = jax.lax.Precision.HIGHEST


def _dft_mats(L):
    """Dense real-DFT matrices matching torch.fft.rfft/irfft with norm='ortho'.

    Fr, Fi: [K, L]  with  Xr = Fr @ x,  Xi = Fi @ x     (K = L//2 + 1)
    Gr, Gi: [L, K]  with  x  = Gr @ Xr + Gi @ Xi
    The Gi columns at bin 0 / Nyquist are exactly zero, which is what the
    Hermitian (C2R) irfft reconstruction does implicitly.
    """
    K = L // 2 + 1
    n = np.arange(L)
    k = np.arange(K)
    s = 1.0 / np.sqrt(L)
    ang_f = 2.0 * np.pi * np.outer(k, n) / L            # [K, L]
    Fr = s * np.cos(ang_f)
    Fi = -s * np.sin(ang_f)
    w = np.full(K, 2.0)
    w[0] = 1.0
    if L % 2 == 0:
        w[-1] = 1.0
    ang_i = 2.0 * np.pi * np.outer(n, k) / L            # [L, K]
    Gr = s * w[None, :] * np.cos(ang_i)
    Gi = -s * w[None, :] * np.sin(ang_i)
    return Fr, Fi, Gr, Gi


def _pick_batch_block(B, N, max_rows=256):
    """Largest bb dividing B with bb*N fc-matmul rows <= max_rows (MXU M dim)."""
    best = 1
    for bb in range(1, B + 1):
        if B % bb == 0 and bb * N <= max_rows:
            best = bb
    return best


def _frets_kernel(x_ref, emb_ref, wpack_ref,
                  mnf_r_ref, mnf_i_ref, mng_r_ref, mng_i_ref,
                  mtf_r_ref, mtf_i_ref, mtg_r_ref, mtg_i_ref,
                  w1_ref, b1_ref, w2_ref, b2_ref,
                  out_ref, *, channel_independence):
    f32 = jnp.float32
    bb, NT, _ = x_ref.shape                 # (batch block, N*T, 1)
    D = emb_ref.shape[-1]
    P = w2_ref.shape[1]
    TD = w1_ref.shape[0]
    T = TD // D
    N = NT // T

    def softshrink(v):
        return jnp.where(v > LAMBDA, v - LAMBDA,
                         jnp.where(v < -LAMBDA, v + LAMBDA, jnp.zeros_like(v)))

    def bmm(m_ref, xb):
        # Same fixed-size DFT operator for every sample -> batched matmul.
        m = jnp.broadcast_to(m_ref[...], (bb,) + tuple(m_ref.shape))
        return jnp.einsum("bkm,bmd->bkd", m, xb, preferred_element_type=f32)

    def fre_stage(xb, fr_ref, fi_ref, gr_ref, gi_ref, dr, di, rb, ib):
        # rfft -> FreMLP (diag weights, elementwise in d) -> irfft
        xr = bmm(fr_ref, xb)
        xi = bmm(fi_ref, xb)
        o_r = softshrink(jnp.maximum(xr * dr - xi * di + rb, 0.0))
        o_i = softshrink(jnp.maximum(xi * dr + xr * di + ib, 0.0))
        return bmm(gr_ref, o_r) + bmm(gi_ref, o_i)

    # tokenEmb in-kernel: (bb, N*T, 1) * (1, 1, D) lane-broadcast multiply.
    x_emb = x_ref[...] * emb_ref[...]                    # (bb, N*T, D) f32
    bias = x_emb

    wp = wpack_ref[...]                                  # (8, D)
    dr1, di1, rb1, ib1 = wp[0], wp[1], wp[2], wp[3]
    dr2, di2, rb2, ib2 = wp[4], wp[5], wp[6], wp[7]

    x_cur = x_emb
    if channel_independence:
        # MLP_channel: rfft over the channel axis N (operator kron(F_N, I_T)).
        x_cur = fre_stage(x_cur, mnf_r_ref, mnf_i_ref, mng_r_ref, mng_i_ref,
                          dr1, di1, rb1, ib1)
    # MLP_temporal: rfft over the time axis T (operator kron(I_N, F_T)).
    y = fre_stage(x_cur, mtf_r_ref, mtf_i_ref, mtg_r_ref, mtg_i_ref,
                  dr2, di2, rb2, ib2)

    # Residual + fc head over bb*N rows (bf16 operands, f32 accumulation).
    z = (y + bias).reshape(bb * N, T * D)
    h = jnp.dot(z.astype(jnp.bfloat16), w1_ref[...],
                preferred_element_type=f32) + b1_ref[...]
    h = jnp.where(h > 0.0, h, LEAKY_SLOPE * h)           # LeakyReLU
    o = jnp.dot(h.astype(jnp.bfloat16), w2_ref[...],
                preferred_element_type=f32) + b2_ref[...]
    out_ref[...] = o.reshape(bb, N, P)


def frets_forward(x, params, *, channel_independence=True, batch_block=None):
    """x: [B, T, N] float32  ->  [B, pred_len, N] float32."""
    B, T, N = x.shape
    D = EMBED
    H = HIDDEN
    P = params["w2"].shape[1]

    bb = batch_block if batch_block is not None else _pick_batch_block(B, N)
    assert B % bb == 0, (B, bb)

    # Fixed-size (bb-independent) per-sample DFT operators on the flattened
    # (n*T + t) row layout of one sample.
    FrN, FiN, GrN, GiN = _dft_mats(N)
    FrT, FiT, GrT, GiT = _dft_mats(T)
    eT = np.eye(T)
    eN = np.eye(N)
    as32 = lambda a: jnp.asarray(a, jnp.float32)
    mnf_r, mnf_i = as32(np.kron(FrN, eT)), as32(np.kron(FiN, eT))  # [K_N*T, N*T]
    mng_r, mng_i = as32(np.kron(GrN, eT)), as32(np.kron(GiN, eT))  # [N*T, K_N*T]
    mtf_r, mtf_i = as32(np.kron(eN, FrT)), as32(np.kron(eN, FiT))  # [N*K_T, N*T]
    mtg_r, mtg_i = as32(np.kron(eN, GrT)), as32(np.kron(eN, GiT))  # [N*T, N*K_T]

    wpack = jnp.stack([params["dr1"], params["di1"], params["rb1"], params["ib1"],
                       params["dr2"], params["di2"], params["rb2"], params["ib2"]],
                      axis=0)                                      # (8, D)

    # Raw values only (no 128x expansion in HBM); tokenEmb happens in-kernel.
    x_col = jnp.transpose(x, (0, 2, 1)).reshape(B, N * T, 1)
    emb = params["emb"].reshape(1, 1, D)
    w1 = params["w1"].astype(jnp.bfloat16)
    w2 = params["w2"].astype(jnp.bfloat16)
    b1 = params["b1"].reshape(1, H)
    b2 = params["b2"].reshape(1, P)

    kernel = functools.partial(_frets_kernel,
                               channel_independence=channel_independence)

    def const(a):
        nd = a.ndim
        return pl.BlockSpec(a.shape, lambda b: (0,) * nd)

    out_bnp = pl.pallas_call(
        kernel,
        out_shape=jax.ShapeDtypeStruct((B, N, P), jnp.float32),
        grid=(B // bb,),
        in_specs=[
            pl.BlockSpec((bb, N * T, 1), lambda b: (b, 0, 0)),
            const(emb), const(wpack),
            const(mnf_r), const(mnf_i), const(mng_r), const(mng_i),
            const(mtf_r), const(mtf_i), const(mtg_r), const(mtg_i),
            const(w1), const(b1), const(w2), const(b2),
        ],
        out_specs=pl.BlockSpec((bb, N, P), lambda b: (b, 0, 0)),
        compiler_params=pltpu.CompilerParams(
            dimension_semantics=("parallel",)),
    )(x_col, emb, wpack,
      mnf_r, mnf_i, mng_r, mng_i, mtf_r, mtf_i, mtg_r, mtg_i,
      w1, b1, w2, b2)

    return jnp.transpose(out_bnp, (0, 2, 1))              # (B, P, N)


def init_params(key, T, N, P):
    """Deterministic synthetic parameters matching the module's shapes."""
    D, H = EMBED, HIDDEN
    ks = jax.random.split(key, 12)
    sc = 0.02
    emb = jax.random.normal(ks[0], (1, D), jnp.float32)
    r1 = sc * jax.random.normal(ks[1], (D, D), jnp.float32)
    i1 = sc * jax.random.normal(ks[2], (D, D), jnp.float32)
    rb1 = sc * jax.random.normal(ks[3], (D,), jnp.float32)
    ib1 = sc * jax.random.normal(ks[4], (D,), jnp.float32)
    r2 = sc * jax.random.normal(ks[5], (D, D), jnp.float32)
    i2 = sc * jax.random.normal(ks[6], (D, D), jnp.float32)
    rb2 = sc * jax.random.normal(ks[7], (D,), jnp.float32)
    ib2 = sc * jax.random.normal(ks[8], (D,), jnp.float32)
    w1 = sc * jax.random.normal(ks[9], (T * D, H), jnp.float32)
    b1 = sc * jax.random.normal(ks[10], (H,), jnp.float32)
    w2 = sc * jax.random.normal(ks[11], (H, P), jnp.float32)
    b2 = jnp.zeros((P,), jnp.float32)
    return dict(
        emb=emb,
        # torch.einsum('bijd,dd->bijd', x, r) only touches diag(r)/diag(i)
        dr1=jnp.diagonal(r1), di1=jnp.diagonal(i1), rb1=rb1, ib1=ib1,
        dr2=jnp.diagonal(r2), di2=jnp.diagonal(i2), rb2=rb2, ib2=ib2,
        w1=w1, b1=b1, w2=w2, b2=b2,
    )


def frets_reference(x, params, *, channel_independence=True):
    """Pure-JAX reference mirroring the PyTorch forward (for verification)."""
    B, T, N = x.shape
    D = EMBED
    emb = params["emb"][0]
    x_emb = jnp.transpose(x, (0, 2, 1))[..., None] * emb        # [B, N, T, D]
    bias = x_emb

    def fremlp(xc, dr, di, rb, ib):
        xr, xi = xc.real, xc.imag
        o_r = jnp.maximum(xr * dr - xi * di + rb, 0.0)
        o_i = jnp.maximum(xi * dr + xr * di + ib, 0.0)
        ss = lambda y: jnp.where(y > LAMBDA, y - LAMBDA,
                                 jnp.where(y < -LAMBDA, y + LAMBDA, 0.0))
        return ss(o_r) + 1j * ss(o_i)

    def zero_ignored_imag(yc, L):
        K = L // 2 + 1
        m = np.ones((K,), np.float32)
        m[0] = 0.0
        if L % 2 == 0:
            m[-1] = 0.0
        m = jnp.asarray(m)[None, None, :, None]
        return yc.real + 1j * (yc.imag * m)                     # irfft ignores these

    x_cur = x_emb
    if channel_independence:
        xc = jnp.transpose(x_cur, (0, 2, 1, 3))                 # [B, T, N, D]
        Xc = jnp.fft.rfft(xc, axis=2, norm="ortho")
        Yc = fremlp(Xc, params["dr1"], params["di1"], params["rb1"], params["ib1"])
        Yc = zero_ignored_imag(Yc, N)
        xc = jnp.fft.irfft(Yc, n=N, axis=2, norm="ortho")
        x_cur = jnp.transpose(xc, (0, 2, 1, 3))
    Xt = jnp.fft.rfft(x_cur, axis=2, norm="ortho")
    Yt = fremlp(Xt, params["dr2"], params["di2"], params["rb2"], params["ib2"])
    Yt = zero_ignored_imag(Yt, T)
    x_cur = jnp.fft.irfft(Yt, n=T, axis=2, norm="ortho")
    x_cur = x_cur + bias

    h = jnp.einsum("bnf,fh->bnh", x_cur.reshape(B, N, T * D), params["w1"],
                   precision=HIGHEST) + params["b1"]
    h = jnp.where(h > 0, h, LEAKY_SLOPE * h)
    out = jnp.einsum("bnh,hp->bnp", h, params["w2"], precision=HIGHEST) + params["b2"]
    return jnp.transpose(out, (0, 2, 1))


if __name__ == "__main__":
    # configs: seq_len=8, pred_len=4, enc_in=4, channel_independence='1'
    B, T, N, P = 2, 8, 4, 4
    key = jax.random.PRNGKey(0)
    kx, kp = jax.random.split(key)
    x = jax.random.normal(kx, (B, T, N), jnp.float32)
    params = init_params(kp, T, N, P)

    fwd = jax.jit(functools.partial(frets_forward, channel_independence=True))
    out = jax.block_until_ready(fwd(x, params))
    assert out.shape == (B, P, N), out.shape

    ref = jax.block_until_ready(frets_reference(x, params, channel_independence=True))
    np.testing.assert_allclose(np.asarray(out), np.asarray(ref), rtol=2e-2, atol=1e-2)

    print("KERNEL_OK")
</pallas_src>

<mosaic_0001>
module attributes {stable_mosaic.version = 11 : i64} {
  func.func @_frets_kernel(%arg0: i32, %arg1: memref<2x32x1xf32, #tpu.memory_space<vmem>>, %arg2: memref<1x1x128xf32, #tpu.memory_space<vmem>>, %arg3: memref<8x128xf32, #tpu.memory_space<vmem>>, %arg4: memref<24x32xf32, #tpu.memory_space<vmem>>, %arg5: memref<24x32xf32, #tpu.memory_space<vmem>>, %arg6: memref<32x24xf32, #tpu.memory_space<vmem>>, %arg7: memref<32x24xf32, #tpu.memory_space<vmem>>, %arg8: memref<20x32xf32, #tpu.memory_space<vmem>>, %arg9: memref<20x32xf32, #tpu.memory_space<vmem>>, %arg10: memref<32x20xf32, #tpu.memory_space<vmem>>, %arg11: memref<32x20xf32, #tpu.memory_space<vmem>>, %arg12: memref<1024x256xbf16, #tpu.memory_space<vmem>>, %arg13: memref<1x256xf32, #tpu.memory_space<vmem>>, %arg14: memref<256x4xbf16, #tpu.memory_space<vmem>>, %arg15: memref<1x4xf32, #tpu.memory_space<vmem>>, %arg16: memref<2x4x4xf32, #tpu.memory_space<vmem>>) attributes {dimension_semantics = [#tpu.dimension_semantics<parallel>], iteration_bounds = array<i64: 1>, scalar_prefetch = 0 : i64, scratch_operands = 0 : i64, tpu.core_type = #tpu.core_type<tc>, window_params = [{transform_indices = @transform_0, window_bounds = array<i64: 2, 32, 1>}, {pipeline_mode = #tpu.pipeline_mode<synchronous>, transform_indices = @transform_1, window_bounds = array<i64: 1, 1, 128>}, {pipeline_mode = #tpu.pipeline_mode<synchronous>, transform_indices = @transform_2, window_bounds = array<i64: 8, 128>}, {pipeline_mode = #tpu.pipeline_mode<synchronous>, transform_indices = @transform_3, window_bounds = array<i64: 24, 32>}, {pipeline_mode = #tpu.pipeline_mode<synchronous>, transform_indices = @transform_4, window_bounds = array<i64: 24, 32>}, {pipeline_mode = #tpu.pipeline_mode<synchronous>, transform_indices = @transform_5, window_bounds = array<i64: 32, 24>}, {pipeline_mode = #tpu.pipeline_mode<synchronous>, transform_indices = @transform_6, window_bounds = array<i64: 32, 24>}, {pipeline_mode = #tpu.pipeline_mode<synchronous>, transform_indices = @transform_7, window_bounds = array<i64: 20, 32>}, {pipeline_mode = #tpu.pipeline_mode<synchronous>, transform_indices = @transform_8, window_bounds = array<i64: 20, 32>}, {pipeline_mode = #tpu.pipeline_mode<synchronous>, transform_indices = @transform_9, window_bounds = array<i64: 32, 20>}, {pipeline_mode = #tpu.pipeline_mode<synchronous>, transform_indices = @transform_10, window_bounds = array<i64: 32, 20>}, {pipeline_mode = #tpu.pipeline_mode<synchronous>, transform_indices = @transform_11, window_bounds = array<i64: 1024, 256>}, {pipeline_mode = #tpu.pipeline_mode<synchronous>, transform_indices = @transform_12, window_bounds = array<i64: 1, 256>}, {pipeline_mode = #tpu.pipeline_mode<synchronous>, transform_indices = @transform_13, window_bounds = array<i64: 256, 4>}, {pipeline_mode = #tpu.pipeline_mode<synchronous>, transform_indices = @transform_14, window_bounds = array<i64: 1, 4>}, {transform_indices = @transform_15, window_bounds = array<i64: 2, 4, 4>}]} {
    %c0 = arith.constant 0 : index
    %c0_0 = arith.constant 0 : index
    %c0_1 = arith.constant 0 : index
    %0 = vector.load %arg1[%c0, %c0_0, %c0_1] : memref<2x32x1xf32, #tpu.memory_space<vmem>>, vector<2x32x1xf32>
    %c0_2 = arith.constant 0 : index
    %c0_3 = arith.constant 0 : index
    %c0_4 = arith.constant 0 : index
    %1 = vector.load %arg2[%c0_2, %c0_3, %c0_4] : memref<1x1x128xf32, #tpu.memory_space<vmem>>, vector<1x1x128xf32>
    %2 = vector.broadcast %0 : vector<2x32x1xf32> to vector<2x32x128xf32>
    %3 = vector.broadcast %1 : vector<1x1x128xf32> to vector<2x32x128xf32>
    %4 = arith.mulf %2, %3 : vector<2x32x128xf32>
    %c0_5 = arith.constant 0 : index
    %c0_6 = arith.constant 0 : index
    %5 = vector.load %arg3[%c0_5, %c0_6] : memref<8x128xf32, #tpu.memory_space<vmem>>, vector<8x128xf32>
    %6 = vector.extract_strided_slice %5 {offsets = [0, 0], sizes = [1, 128], strides = [1, 1]} : vector<8x128xf32> to vector<1x128xf32>
    %7 = vector.shape_cast %6 : vector<1x128xf32> to vector<128xf32>
    %8 = vector.extract_strided_slice %5 {offsets = [1, 0], sizes = [1, 128], strides = [1, 1]} : vector<8x128xf32> to vector<1x128xf32>
    %9 = vector.shape_cast %8 : vector<1x128xf32> to vector<128xf32>
    %10 = vector.extract_strided_slice %5 {offsets = [2, 0], sizes = [1, 128], strides = [1, 1]} : vector<8x128xf32> to vector<1x128xf32>
    %11 = vector.shape_cast %10 : vector<1x128xf32> to vector<128xf32>
    %12 = vector.extract_strided_slice %5 {offsets = [3, 0], sizes = [1, 128], strides = [1, 1]} : vector<8x128xf32> to vector<1x128xf32>
    %13 = vector.shape_cast %12 : vector<1x128xf32> to vector<128xf32>
    %14 = vector.extract_strided_slice %5 {offsets = [4, 0], sizes = [1, 128], strides = [1, 1]} : vector<8x128xf32> to vector<1x128xf32>
    %15 = vector.shape_cast %14 : vector<1x128xf32> to vector<128xf32>
    %16 = vector.extract_strided_slice %5 {offsets = [5, 0], sizes = [1, 128], strides = [1, 1]} : vector<8x128xf32> to vector<1x128xf32>
    %17 = vector.shape_cast %16 : vector<1x128xf32> to vector<128xf32>
    %18 = vector.extract_strided_slice %5 {offsets = [6, 0], sizes = [1, 128], strides = [1, 1]} : vector<8x128xf32> to vector<1x128xf32>
    %19 = vector.shape_cast %18 : vector<1x128xf32> to vector<128xf32>
    %20 = vector.extract_strided_slice %5 {offsets = [7, 0], sizes = [1, 128], strides = [1, 1]} : vector<8x128xf32> to vector<1x128xf32>
    %21 = vector.shape_cast %20 : vector<1x128xf32> to vector<128xf32>
    %c0_7 = arith.constant 0 : index
    %c0_8 = arith.constant 0 : index
    %22 = vector.load %arg4[%c0_7, %c0_8] : memref<24x32xf32, #tpu.memory_space<vmem>>, vector<24x32xf32>
    %23 = vector.shape_cast %22 : vector<24x32xf32> to vector<1x24x32xf32>
    %24 = vector.broadcast %23 : vector<1x24x32xf32> to vector<2x24x32xf32>
    "tpu.trace_start"() <{level = 10 : i32, message = "bkm,bmd->bkd"}> : () -> ()
    %cst = arith.constant dense<0.000000e+00> : vector<2x24x128xf32>
    %25 = tpu.matmul %24, %4, %cst {dimension_numbers = #tpu.dot_dimension_numbers<[2], [1], [1], [2], [0, 0, 0, 1, 1, 2], [0], [0]>} : vector<2x24x32xf32>, vector<2x32x128xf32>, vector<2x24x128xf32> -> vector<2x24x128xf32>
    "tpu.trace_stop"() : () -> ()
    %c0_9 = arith.constant 0 : index
    %c0_10 = arith.constant 0 : index
    %26 = vector.load %arg5[%c0_9, %c0_10] : memref<24x32xf32, #tpu.memory_space<vmem>>, vector<24x32xf32>
    %27 = vector.shape_cast %26 : vector<24x32xf32> to vector<1x24x32xf32>
    %28 = vector.broadcast %27 : vector<1x24x32xf32> to vector<2x24x32xf32>
    "tpu.trace_start"() <{level = 10 : i32, message = "bkm,bmd->bkd"}> : () -> ()
    %cst_11 = arith.constant dense<0.000000e+00> : vector<2x24x128xf32>
    %29 = tpu.matmul %28, %4, %cst_11 {dimension_numbers = #tpu.dot_dimension_numbers<[2], [1], [1], [2], [0, 0, 0, 1, 1, 2], [0], [0]>} : vector<2x24x32xf32>, vector<2x32x128xf32>, vector<2x24x128xf32> -> vector<2x24x128xf32>
    "tpu.trace_stop"() : () -> ()
    %30 = vector.shape_cast %7 : vector<128xf32> to vector<1x1x128xf32>
    %31 = vector.broadcast %30 : vector<1x1x128xf32> to vector<2x24x128xf32>
    %32 = arith.mulf %25, %31 : vector<2x24x128xf32>
    %33 = vector.shape_cast %9 : vector<128xf32> to vector<1x1x128xf32>
    %34 = vector.broadcast %33 : vector<1x1x128xf32> to vector<2x24x128xf32>
    %35 = arith.mulf %29, %34 : vector<2x24x128xf32>
    %36 = arith.subf %32, %35 : vector<2x24x128xf32>
    %37 = vector.shape_cast %11 : vector<128xf32> to vector<1x1x128xf32>
    %38 = vector.broadcast %37 : vector<1x1x128xf32> to vector<2x24x128xf32>
    %39 = arith.addf %36, %38 : vector<2x24x128xf32>
    %cst_12 = arith.constant 0.000000e+00 : f32
    %40 = vector.broadcast %cst_12 : f32 to vector<2x24x128xf32>
    %41 = arith.maximumf %39, %40 : vector<2x24x128xf32>
    %cst_13 = arith.constant 0.00999999977 : f32
    %42 = vector.broadcast %cst_13 : f32 to vector<2x24x128xf32>
    %43 = arith.cmpf ogt, %41, %42 : vector<2x24x128xf32>
    %cst_14 = arith.constant 0.00999999977 : f32
    %44 = vector.broadcast %cst_14 : f32 to vector<2x24x128xf32>
    %45 = arith.subf %41, %44 : vector<2x24x128xf32>
    %cst_15 = arith.constant -0.00999999977 : f32
    %46 = vector.broadcast %cst_15 : f32 to vector<2x24x128xf32>
    %47 = arith.cmpf olt, %41, %46 : vector<2x24x128xf32>
    %cst_16 = arith.constant 0.00999999977 : f32
    %48 = vector.broadcast %cst_16 : f32 to vector<2x24x128xf32>
    %49 = arith.addf %41, %48 : vector<2x24x128xf32>
    %cst_17 = arith.constant 0.000000e+00 : f32
    %50 = vector.broadcast %cst_17 : f32 to vector<2x24x128xf32>
    %51 = arith.select %47, %49, %50 : vector<2x24x128xi1>, vector<2x24x128xf32>
    %52 = arith.select %43, %45, %51 : vector<2x24x128xi1>, vector<2x24x128xf32>
    %53 = vector.shape_cast %7 : vector<128xf32> to vector<1x1x128xf32>
    %54 = vector.broadcast %53 : vector<1x1x128xf32> to vector<2x24x128xf32>
    %55 = arith.mulf %29, %54 : vector<2x24x128xf32>
    %56 = vector.shape_cast %9 : vector<128xf32> to vector<1x1x128xf32>
    %57 = vector.broadcast %56 : vector<1x1x128xf32> to vector<2x24x128xf32>
    %58 = arith.mulf %25, %57 : vector<2x24x128xf32>
    %59 = arith.addf %55, %58 : vector<2x24x128xf32>
    %60 = vector.shape_cast %13 : vector<128xf32> to vector<1x1x128xf32>
    %61 = vector.broadcast %60 : vector<1x1x128xf32> to vector<2x24x128xf32>
    %62 = arith.addf %59, %61 : vector<2x24x128xf32>
    %cst_18 = arith.constant 0.000000e+00 : f32
    %63 = vector.broadcast %cst_18 : f32 to vector<2x24x128xf32>
    %64 = arith.maximumf %62, %63 : vector<2x24x128xf32>
    %cst_19 = arith.constant 0.00999999977 : f32
    %65 = vector.broadcast %cst_19 : f32 to vector<2x24x128xf32>
    %66 = arith.cmpf ogt, %64, %65 : vector<2x24x128xf32>
    %cst_20 = arith.constant 0.00999999977 : f32
    %67 = vector.broadcast %cst_20 : f32 to vector<2x24x128xf32>
    %68 = arith.subf %64, %67 : vector<2x24x128xf32>
    %cst_21 = arith.constant -0.00999999977 : f32
    %69 = vector.broadcast %cst_21 : f32 to vector<2x24x128xf32>
    %70 = arith.cmpf olt, %64, %69 : vector<2x24x128xf32>
    %cst_22 = arith.constant 0.00999999977 : f32
    %71 = vector.broadcast %cst_22 : f32 to vector<2x24x128xf32>
    %72 = arith.addf %64, %71 : vector<2x24x128xf32>
    %cst_23 = arith.constant 0.000000e+00 : f32
    %73 = vector.broadcast %cst_23 : f32 to vector<2x24x128xf32>
    %74 = arith.select %70, %72, %73 : vector<2x24x128xi1>, vector<2x24x128xf32>
    %75 = arith.select %66, %68, %74 : vector<2x24x128xi1>, vector<2x24x128xf32>
    %c0_24 = arith.constant 0 : index
    %c0_25 = arith.constant 0 : index
    %76 = vector.load %arg6[%c0_24, %c0_25] : memref<32x24xf32, #tpu.memory_space<vmem>>, vector<32x24xf32>
    %77 = vector.shape_cast %76 : vector<32x24xf32> to vector<1x32x24xf32>
    %78 = vector.broadcast %77 : vector<1x32x24xf32> to vector<2x32x24xf32>
    "tpu.trace_start"() <{level = 10 : i32, message = "bkm,bmd->bkd"}> : () -> ()
    %cst_26 = arith.constant dense<0.000000e+00> : vector<2x32x128xf32>
    %79 = tpu.matmul %78, %52, %cst_26 {dimension_numbers = #tpu.dot_dimension_numbers<[2], [1], [1], [2], [0, 0, 0, 1, 1, 2], [0], [0]>} : vector<2x32x24xf32>, vector<2x24x128xf32>, vector<2x32x128xf32> -> vector<2x32x128xf32>
    "tpu.trace_stop"() : () -> ()
    %c0_27 = arith.constant 0 : index
    %c0_28 = arith.constant 0 : index
    %80 = vector.load %arg7[%c0_27, %c0_28] : memref<32x24xf32, #tpu.memory_space<vmem>>, vector<32x24xf32>
    %81 = vector.shape_cast %80 : vector<32x24xf32> to vector<1x32x24xf32>
    %82 = vector.broadcast %81 : vector<1x32x24xf32> to vector<2x32x24xf32>
    "tpu.trace_start"() <{level = 10 : i32, message = "bkm,bmd->bkd"}> : () -> ()
    %cst_29 = arith.constant dense<0.000000e+00> : vector<2x32x128xf32>
    %83 = tpu.matmul %82, %75, %cst_29 {dimension_numbers = #tpu.dot_dimension_numbers<[2], [1], [1], [2], [0, 0, 0, 1, 1, 2], [0], [0]>} : vector<2x32x24xf32>, vector<2x24x128xf32>, vector<2x32x128xf32> -> vector<2x32x128xf32>
    "tpu.trace_stop"() : () -> ()
    %84 = arith.addf %79, %83 : vector<2x32x128xf32>
    %c0_30 = arith.constant 0 : index
    %c0_31 = arith.constant 0 : index
    %85 = vector.load %arg8[%c0_30, %c0_31] : memref<20x32xf32, #tpu.memory_space<vmem>>, vector<20x32xf32>
    %86 = vector.shape_cast %85 : vector<20x32xf32> to vector<1x20x32xf32>
    %87 = vector.broadcast %86 : vector<1x20x32xf32> to vector<2x20x32xf32>
    "tpu.trace_start"() <{level = 10 : i32, message = "bkm,bmd->bkd"}> : () -> ()
    %cst_32 = arith.constant dense<0.000000e+00> : vector<2x20x128xf32>
    %88 = tpu.matmul %87, %84, %cst_32 {dimension_numbers = #tpu.dot_dimension_numbers<[2], [1], [1], [2], [0, 0, 0, 1, 1, 2], [0], [0]>} : vector<2x20x32xf32>, vector<2x32x128xf32>, vector<2x20x128xf32> -> vector<2x20x128xf32>
    "tpu.trace_stop"() : () -> ()
    %c0_33 = arith.constant 0 : index
    %c0_34 = arith.constant 0 : index
    %89 = vector.load %arg9[%c0_33, %c0_34] : memref<20x32xf32, #tpu.memory_space<vmem>>, vector<20x32xf32>
    %90 = vector.shape_cast %89 : vector<20x32xf32> to vector<1x20x32xf32>
    %91 = vector.broadcast %90 : vector<1x20x32xf32> to vector<2x20x32xf32>
    "tpu.trace_start"() <{level = 10 : i32, message = "bkm,bmd->bkd"}> : () -> ()
    %cst_35 = arith.constant dense<0.000000e+00> : vector<2x20x128xf32>
    %92 = tpu.matmul %91, %84, %cst_35 {dimension_numbers = #tpu.dot_dimension_numbers<[2], [1], [1], [2], [0, 0, 0, 1, 1, 2], [0], [0]>} : vector<2x20x32xf32>, vector<2x32x128xf32>, vector<2x20x128xf32> -> vector<2x20x128xf32>
    "tpu.trace_stop"() : () -> ()
    %93 = vector.shape_cast %15 : vector<128xf32> to vector<1x1x128xf32>
    %94 = vector.broadcast %93 : vector<1x1x128xf32> to vector<2x20x128xf32>
    %95 = arith.mulf %88, %94 : vector<2x20x128xf32>
    %96 = vector.shape_cast %17 : vector<128xf32> to vector<1x1x128xf32>
    %97 = vector.broadcast %96 : vector<1x1x128xf32> to vector<2x20x128xf32>
    %98 = arith.mulf %92, %97 : vector<2x20x128xf32>
    %99 = arith.subf %95, %98 : vector<2x20x128xf32>
    %100 = vector.shape_cast %19 : vector<128xf32> to vector<1x1x128xf32>
    %101 = vector.broadcast %100 : vector<1x1x128xf32> to vector<2x20x128xf32>
    %102 = arith.addf %99, %101 : vector<2x20x128xf32>
    %cst_36 = arith.constant 0.000000e+00 : f32
    %103 = vector.broadcast %cst_36 : f32 to vector<2x20x128xf32>
    %104 = arith.maximumf %102, %103 : vector<2x20x128xf32>
    %cst_37 = arith.constant 0.00999999977 : f32
    %105 = vector.broadcast %cst_37 : f32 to vector<2x20x128xf32>
    %106 = arith.cmpf ogt, %104, %105 : vector<2x20x128xf32>
    %cst_38 = arith.constant 0.00999999977 : f32
    %107 = vector.broadcast %cst_38 : f32 to vector<2x20x128xf32>
    %108 = arith.subf %104, %107 : vector<2x20x128xf32>
    %cst_39 = arith.constant -0.00999999977 : f32
    %109 = vector.broadcast %cst_39 : f32 to vector<2x20x128xf32>
    %110 = arith.cmpf olt, %104, %109 : vector<2x20x128xf32>
    %cst_40 = arith.constant 0.00999999977 : f32
    %111 = vector.broadcast %cst_40 : f32 to vector<2x20x128xf32>
    %112 = arith.addf %104, %111 : vector<2x20x128xf32>
    %cst_41 = arith.constant 0.000000e+00 : f32
    %113 = vector.broadcast %cst_41 : f32 to vector<2x20x128xf32>
    %114 = arith.select %110, %112, %113 : vector<2x20x128xi1>, vector<2x20x128xf32>
    %115 = arith.select %106, %108, %114 : vector<2x20x128xi1>, vector<2x20x128xf32>
    %116 = vector.shape_cast %15 : vector<128xf32> to vector<1x1x128xf32>
    %117 = vector.broadcast %116 : vector<1x1x128xf32> to vector<2x20x128xf32>
    %118 = arith.mulf %92, %117 : vector<2x20x128xf32>
    %119 = vector.shape_cast %17 : vector<128xf32> to vector<1x1x128xf32>
    %120 = vector.broadcast %119 : vector<1x1x128xf32> to vector<2x20x128xf32>
    %121 = arith.mulf %88, %120 : vector<2x20x128xf32>
    %122 = arith.addf %118, %121 : vector<2x20x128xf32>
    %123 = vector.shape_cast %21 : vector<128xf32> to vector<1x1x128xf32>
    %124 = vector.broadcast %123 : vector<1x1x128xf32> to vector<2x20x128xf32>
    %125 = arith.addf %122, %124 : vector<2x20x128xf32>
    %cst_42 = arith.constant 0.000000e+00 : f32
    %126 = vector.broadcast %cst_42 : f32 to vector<2x20x128xf32>
    %127 = arith.maximumf %125, %126 : vector<2x20x128xf32>
    %cst_43 = arith.constant 0.00999999977 : f32
    %128 = vector.broadcast %cst_43 : f32 to vector<2x20x128xf32>
    %129 = arith.cmpf ogt, %127, %128 : vector<2x20x128xf32>
    %cst_44 = arith.constant 0.00999999977 : f32
    %130 = vector.broadcast %cst_44 : f32 to vector<2x20x128xf32>
    %131 = arith.subf %127, %130 : vector<2x20x128xf32>
    %cst_45 = arith.constant -0.00999999977 : f32
    %132 = vector.broadcast %cst_45 : f32 to vector<2x20x128xf32>
    %133 = arith.cmpf olt, %127, %132 : vector<2x20x128xf32>
    %cst_46 = arith.constant 0.00999999977 : f32
    %134 = vector.broadcast %cst_46 : f32 to vector<2x20x128xf32>
    %135 = arith.addf %127, %134 : vector<2x20x128xf32>
    %cst_47 = arith.constant 0.000000e+00 : f32
    %136 = vector.broadcast %cst_47 : f32 to vector<2x20x128xf32>
    %137 = arith.select %133, %135, %136 : vector<2x20x128xi1>, vector<2x20x128xf32>
    %138 = arith.select %129, %131, %137 : vector<2x20x128xi1>, vector<2x20x128xf32>
    %c0_48 = arith.constant 0 : index
    %c0_49 = arith.constant 0 : index
    %139 = vector.load %arg10[%c0_48, %c0_49] : memref<32x20xf32, #tpu.memory_space<vmem>>, vector<32x20xf32>
    %140 = vector.shape_cast %139 : vector<32x20xf32> to vector<1x32x20xf32>
    %141 = vector.broadcast %140 : vector<1x32x20xf32> to vector<2x32x20xf32>
    "tpu.trace_start"() <{level = 10 : i32, message = "bkm,bmd->bkd"}> : () -> ()
    %cst_50 = arith.constant dense<0.000000e+00> : vector<2x32x128xf32>
    %142 = tpu.matmul %141, %115, %cst_50 {dimension_numbers = #tpu.dot_dimension_numbers<[2], [1], [1], [2], [0, 0, 0, 1, 1, 2], [0], [0]>} : vector<2x32x20xf32>, vector<2x20x128xf32>, vector<2x32x128xf32> -> vector<2x32x128xf32>
    "tpu.trace_stop"() : () -> ()
    %c0_51 = arith.constant 0 : index
    %c0_52 = arith.constant 0 : index
    %143 = vector.load %arg11[%c0_51, %c0_52] : memref<32x20xf32, #tpu.memory_space<vmem>>, vector<32x20xf32>
    %144 = vector.shape_cast %143 : vector<32x20xf32> to vector<1x32x20xf32>
    %145 = vector.broadcast %144 : vector<1x32x20xf32> to vector<2x32x20xf32>
    "tpu.trace_start"() <{level = 10 : i32, message = "bkm,bmd->bkd"}> : () -> ()
    %cst_53 = arith.constant dense<0.000000e+00> : vector<2x32x128xf32>
    %146 = tpu.matmul %145, %138, %cst_53 {dimension_numbers = #tpu.dot_dimension_numbers<[2], [1], [1], [2], [0, 0, 0, 1, 1, 2], [0], [0]>} : vector<2x32x20xf32>, vector<2x20x128xf32>, vector<2x32x128xf32> -> vector<2x32x128xf32>
    "tpu.trace_stop"() : () -> ()
    %147 = arith.addf %142, %146 : vector<2x32x128xf32>
    %148 = arith.addf %147, %4 : vector<2x32x128xf32>
    %149 = vector.shape_cast %148 : vector<2x32x128xf32> to vector<8x1024xf32>
    %150 = arith.truncf %149 : vector<8x1024xf32> to vector<8x1024xbf16>
    %c0_54 = arith.constant 0 : index
    %c0_55 = arith.constant 0 : index
    %151 = vector.load %arg12[%c0_54, %c0_55] : memref<1024x256xbf16, #tpu.memory_space<vmem>>, vector<1024x256xbf16>
    %cst_56 = arith.constant dense<0.000000e+00> : vector<8x256xf32>
    %152 = tpu.matmul %150, %151, %cst_56 {dimension_numbers = #tpu.dot_dimension_numbers<[1], [0], [0], [1], [0, 0, 1, 1], [], []>} : vector<8x1024xbf16>, vector<1024x256xbf16>, vector<8x256xf32> -> vector<8x256xf32>
    %c0_57 = arith.constant 0 : index
    %c0_58 = arith.constant 0 : index
    %153 = vector.load %arg13[%c0_57, %c0_58] : memref<1x256xf32, #tpu.memory_space<vmem>>, vector<1x256xf32>
    %154 = vector.broadcast %153 : vector<1x256xf32> to vector<8x256xf32>
    %155 = arith.addf %152, %154 : vector<8x256xf32>
    %cst_59 = arith.constant 0.000000e+00 : f32
    %156 = vector.broadcast %cst_59 : f32 to vector<8x256xf32>
    %157 = arith.cmpf ogt, %155, %156 : vector<8x256xf32>
    %cst_60 = arith.constant 0.00999999977 : f32
    %158 = vector.broadcast %cst_60 : f32 to vector<8x256xf32>
    %159 = arith.mulf %158, %155 : vector<8x256xf32>
    %160 = arith.select %157, %155, %159 : vector<8x256xi1>, vector<8x256xf32>
    %161 = arith.truncf %160 : vector<8x256xf32> to vector<8x256xbf16>
    %c0_61 = arith.constant 0 : index
    %c0_62 = arith.constant 0 : index
    %162 = vector.load %arg14[%c0_61, %c0_62] : memref<256x4xbf16, #tpu.memory_space<vmem>>, vector<256x4xbf16>
    %cst_63 = arith.constant dense<0.000000e+00> : vector<8x4xf32>
    %163 = tpu.matmul %161, %162, %cst_63 {dimension_numbers = #tpu.dot_dimension_numbers<[1], [0], [0], [1], [0, 0, 1, 1], [], []>} : vector<8x256xbf16>, vector<256x4xbf16>, vector<8x4xf32> -> vector<8x4xf32>
    %c0_64 = arith.constant 0 : index
    %c0_65 = arith.constant 0 : index
    %164 = vector.load %arg15[%c0_64, %c0_65] : memref<1x4xf32, #tpu.memory_space<vmem>>, vector<1x4xf32>
    %165 = vector.broadcast %164 : vector<1x4xf32> to vector<8x4xf32>
    %166 = arith.addf %163, %165 : vector<8x4xf32>
    %167 = vector.shape_cast %166 : vector<8x4xf32> to vector<2x4x4xf32>
    %c0_66 = arith.constant 0 : index
    %c0_67 = arith.constant 0 : index
    %c0_68 = arith.constant 0 : index
    %168 = vector.load %arg16[%c0_66, %c0_67, %c0_68] : memref<2x4x4xf32, #tpu.memory_space<vmem>>, vector<2x4x4xf32>
    tpu.vector_store %arg16[%c0_66, %c0_67, %c0_68], %167 {strides = array<i32>} : memref<2x4x4xf32, #tpu.memory_space<vmem>>, vector<2x4x4xf32>,
    return
  }
  func.func @transform_0(%arg0: i32) -> (i32, i32, i32) {
    %c0_i32 = arith.constant 0 : i32
    %c0_i32_0 = arith.constant 0 : i32
    %c0_i32_1 = arith.constant 0 : i32
    return %arg0, %c0_i32, %c0_i32_0 : i32, i32, i32
  }
  func.func @transform_1(%arg0: i32) -> (i32, i32, i32) {
    %c0_i32 = arith.constant 0 : i32
    %c0_i32_0 = arith.constant 0 : i32
    %c0_i32_1 = arith.constant 0 : i32
    %c0_i32_2 = arith.constant 0 : i32
    return %c0_i32, %c0_i32_0, %c0_i32_1 : i32, i32, i32
  }
  func.func @transform_2(%arg0: i32) -> (i32, i32) {
    %c0_i32 = arith.constant 0 : i32
    %c0_i32_0 = arith.constant 0 : i32
    %c0_i32_1 = arith.constant 0 : i32
    return %c0_i32, %c0_i32_0 : i32, i32
  }
  func.func @transform_3(%arg0: i32) -> (i32, i32) {
    %c0_i32 = arith.constant 0 : i32
    %c0_i32_0 = arith.constant 0 : i32
    %c0_i32_1 = arith.constant 0 : i32
    return %c0_i32, %c0_i32_0 : i32, i32
  }
  func.func @transform_4(%arg0: i32) -> (i32, i32) {
    %c0_i32 = arith.constant 0 : i32
    %c0_i32_0 = arith.constant 0 : i32
    %c0_i32_1 = arith.constant 0 : i32
    return %c0_i32, %c0_i32_0 : i32, i32
  }
  func.func @transform_5(%arg0: i32) -> (i32, i32) {
    %c0_i32 = arith.constant 0 : i32
    %c0_i32_0 = arith.constant 0 : i32
    %c0_i32_1 = arith.constant 0 : i32
    return %c0_i32, %c0_i32_0 : i32, i32
  }
  func.func @transform_6(%arg0: i32) -> (i32, i32) {
    %c0_i32 = arith.constant 0 : i32
    %c0_i32_0 = arith.constant 0 : i32
    %c0_i32_1 = arith.constant 0 : i32
    return %c0_i32, %c0_i32_0 : i32, i32
  }
  func.func @transform_7(%arg0: i32) -> (i32, i32) {
    %c0_i32 = arith.constant 0 : i32
    %c0_i32_0 = arith.constant 0 : i32
    %c0_i32_1 = arith.constant 0 : i32
    return %c0_i32, %c0_i32_0 : i32, i32
  }
  func.func @transform_8(%arg0: i32) -> (i32, i32) {
    %c0_i32 = arith.constant 0 : i32
    %c0_i32_0 = arith.constant 0 : i32
    %c0_i32_1 = arith.constant 0 : i32
    return %c0_i32, %c0_i32_0 : i32, i32
  }
  func.func @transform_9(%arg0: i32) -> (i32, i32) {
    %c0_i32 = arith.constant 0 : i32
    %c0_i32_0 = arith.constant 0 : i32
    %c0_i32_1 = arith.constant 0 : i32
    return %c0_i32, %c0_i32_0 : i32, i32
  }
  func.func @transform_10(%arg0: i32) -> (i32, i32) {
    %c0_i32 = arith.constant 0 : i32
    %c0_i32_0 = arith.constant 0 : i32
    %c0_i32_1 = arith.constant 0 : i32
    return %c0_i32, %c0_i32_0 : i32, i32
  }
  func.func @transform_11(%arg0: i32) -> (i32, i32) {
    %c0_i32 = arith.constant 0 : i32
    %c0_i32_0 = arith.constant 0 : i32
    %c0_i32_1 = arith.constant 0 : i32
    return %c0_i32, %c0_i32_0 : i32, i32
  }
  func.func @transform_12(%arg0: i32) -> (i32, i32) {
    %c0_i32 = arith.constant 0 : i32
    %c0_i32_0 = arith.constant 0 : i32
    %c0_i32_1 = arith.constant 0 : i32
    return %c0_i32, %c0_i32_0 : i32, i32
  }
  func.func @transform_13(%arg0: i32) -> (i32, i32) {
    %c0_i32 = arith.constant 0 : i32
    %c0_i32_0 = arith.constant 0 : i32
    %c0_i32_1 = arith.constant 0 : i32
    return %c0_i32, %c0_i32_0 : i32, i32
  }
  func.func @transform_14(%arg0: i32) -> (i32, i32) {
    %c0_i32 = arith.constant 0 : i32
    %c0_i32_0 = arith.constant 0 : i32
    %c0_i32_1 = arith.constant 0 : i32
    return %c0_i32, %c0_i32_0 : i32, i32
  }
  func.func @transform_15(%arg0: i32) -> (i32, i32, i32) {
    %c0_i32 = arith.constant 0 : i32
    %c0_i32_0 = arith.constant 0 : i32
    %c0_i32_1 = arith.constant 0 : i32
    return %arg0, %c0_i32, %c0_i32_0 : i32, i32, i32
  }
}

</mosaic_0001>

<llo_original>
// kernel: frets_forward.1
$region0: #{frets_forward.1}
  #allocation0 [shape = 'u32[]', space=smem, size = 0x4, offset = 0x4, fixed_abs, tag = 'smem constant byte address 0x4 - core index']
  #allocation1 [shape = 'u32[72,128]{1,0:T(1,128)}', space=vmem, size = 0x9000, scoped, tag = 'internal scratch']
  %s0 = inlined_call_operand.vmem [shape: f32[2,32,1], index: 0, kind: input, shape index: {}]
  %s1 = inlined_call_operand.vmem [shape: f32[1,1,128], index: 1, kind: input, shape index: {}]
  %s2 = inlined_call_operand.vmem [shape: f32[8,128], index: 2, kind: input, shape index: {}]
  %s3 = inlined_call_operand.vmem [shape: f32[24,32], index: 3, kind: input, shape index: {}]
  %s4 = inlined_call_operand.vmem [shape: f32[24,32], index: 4, kind: input, shape index: {}]
  %s5 = inlined_call_operand.vmem [shape: f32[32,24], index: 5, kind: input, shape index: {}]
  %s6 = inlined_call_operand.vmem [shape: f32[32,24], index: 6, kind: input, shape index: {}]
  %s7 = inlined_call_operand.vmem [shape: f32[20,32], index: 7, kind: input, shape index: {}]
  %s8 = inlined_call_operand.vmem [shape: f32[20,32], index: 8, kind: input, shape index: {}]
  %s9 = inlined_call_operand.vmem [shape: f32[32,20], index: 9, kind: input, shape index: {}]
  %s10 = inlined_call_operand.vmem [shape: f32[32,20], index: 10, kind: input, shape index: {}]
  %s11 = inlined_call_operand.vmem [shape: bf16[1024,256], index: 11, kind: input, shape index: {}]
  %s12 = inlined_call_operand.vmem [shape: f32[1,256], index: 12, kind: input, shape index: {}]
  %s13 = inlined_call_operand.vmem [shape: bf16[256,4], index: 13, kind: input, shape index: {}]
  %s14 = inlined_call_operand.vmem [shape: f32[1,4], index: 14, kind: input, shape index: {}]
  %s15 = inlined_call_operand.vmem [shape: f32[2,4,4], index: 15, kind: output, shape index: {}]
  %s16 = sld [smem:[#allocation0]]
  $region70: #{frets_forward.1} parent=0
    _
  %s18 = ssub.s32 1, %s16
  %s19 = scalar_select 0, %s18, %s16
  // Predicated region
  $region2: #{frets_forward.1} parent=0 // pred_check
    _
  $region3: #{frets_forward.1} parent=0 // pred_check_branch
    %21 = sbr.rel (0) target = $region5
  $region4: #{frets_forward.1} parent=0 // pred_region
    _
  $region5: #{frets_forward.1} parent=0 // pred_fallthru
    _
  // Predicated region
  $region6: #{frets_forward.1} parent=0 // pred_check
    _
  $region7: #{frets_forward.1} parent=0 // pred_check_branch
    %23 = sbr.rel (0) target = $region9
  $region8: #{frets_forward.1} parent=0 // pred_region
    _
  $region9: #{frets_forward.1} parent=0 // pred_fallthru
    _
  // Predicated region
  $region10: #{frets_forward.1} parent=0 // pred_check
    _
  $region11: #{frets_forward.1} parent=0 // pred_check_branch
    %25 = sbr.rel (0) target = $region13
  $region12: #{frets_forward.1} parent=0 // pred_region
    _
  $region13: #{frets_forward.1} parent=0 // pred_fallthru
    _
  // Predicated region
  $region14: #{frets_forward.1} parent=0 // pred_check
    _
  $region15: #{frets_forward.1} parent=0 // pred_check_branch
    %27 = sbr.rel (0) target = $region17
  $region16: #{frets_forward.1} parent=0 // pred_region
    _
  $region17: #{frets_forward.1} parent=0 // pred_fallthru
    _
  // Predicated region
  $region18: #{frets_forward.1} parent=0 // pred_check
    _
  $region19: #{frets_forward.1} parent=0 // pred_check_branch
    %29 = sbr.rel (0) target = $region21
  $region20: #{frets_forward.1} parent=0 // pred_region
    _
  $region21: #{frets_forward.1} parent=0 // pred_fallthru
    _
  // Predicated region
  $region22: #{frets_forward.1} parent=0 // pred_check
    _
  $region23: #{frets_forward.1} parent=0 // pred_check_branch
    %31 = sbr.rel (0) target = $region25
  $region24: #{frets_forward.1} parent=0 // pred_region
    _
  $region25: #{frets_forward.1} parent=0 // pred_fallthru
    _
  // Predicated region
  $region26: #{frets_forward.1} parent=0 // pred_check
    _
  $region27: #{frets_forward.1} parent=0 // pred_check_branch
    %33 = sbr.rel (0) target = $region29
  $region28: #{frets_forward.1} parent=0 // pred_region
    _
  $region29: #{frets_forward.1} parent=0 // pred_fallthru
    _
  // Predicated region
  $region30: #{frets_forward.1} parent=0 // pred_check
    _
  $region31: #{frets_forward.1} parent=0 // pred_check_branch
    %35 = sbr.rel (0) target = $region33
  $region32: #{frets_forward.1} parent=0 // pred_region
    _
  $region33: #{frets_forward.1} parent=0 // pred_fallthru
    _
  // Predicated region
  $region34: #{frets_forward.1} parent=0 // pred_check
    _
  $region35: #{frets_forward.1} parent=0 // pred_check_branch
    %37 = sbr.rel (0) target = $region37
  $region36: #{frets_forward.1} parent=0 // pred_region
    _
  $region37: #{frets_forward.1} parent=0 // pred_fallthru
    _
  // Predicated region
  $region38: #{frets_forward.1} parent=0 // pred_check
    _
  $region39: #{frets_forward.1} parent=0 // pred_check_branch
    %39 = sbr.rel (0) target = $region41
  $region40: #{frets_forward.1} parent=0 // pred_region
    _
  $region41: #{frets_forward.1} parent=0 // pred_fallthru
    _
  // Predicated region
  $region42: #{frets_forward.1} parent=0 // pred_check
    _
  $region43: #{frets_forward.1} parent=0 // pred_check_branch
    %41 = sbr.rel (0) target = $region45
  $region44: #{frets_forward.1} parent=0 // pred_region
    _
  $region45: #{frets_forward.1} parent=0 // pred_fallthru
    _
  // Predicated region
  $region46: #{frets_forward.1} parent=0 // pred_check
    _
  $region47: #{frets_forward.1} parent=0 // pred_check_branch
    %43 = sbr.rel (0) target = $region49
  $region48: #{frets_forward.1} parent=0 // pred_region
    _
  $region49: #{frets_forward.1} parent=0 // pred_fallthru
    _
  // Predicated region
  $region50: #{frets_forward.1} parent=0 // pred_check
    _
  $region51: #{frets_forward.1} parent=0 // pred_check_branch
    %45 = sbr.rel (0) target = $region53
  $region52: #{frets_forward.1} parent=0 // pred_region
    _
  $region53: #{frets_forward.1} parent=0 // pred_fallthru
    _
  // Predicated region
  $region54: #{frets_forward.1} parent=0 // pred_check
    _
  $region55: #{frets_forward.1} parent=0 // pred_check_branch
    %47 = sbr.rel (0) target = $region57
  $region56: #{frets_forward.1} parent=0 // pred_region
    _
  $region57: #{frets_forward.1} parent=0 // pred_fallthru
    _
  // Predicated region
  $region58: #{frets_forward.1} parent=0 // pred_check
    _
  $region59: #{frets_forward.1} parent=0 // pred_check_branch
    %49 = sbr.rel (0) target = $region61
  $region60: #{frets_forward.1} parent=0 // pred_region
    _
  $region61: #{frets_forward.1} parent=0 // pred_fallthru
    _
  %v50 = vld [vmem:[%s0] sm:$0xff]
  %v51 = vld [vmem:[%s0 + $0x8] sm:$0xff]
  %v52 = vld [vmem:[%s0 + $0x10] sm:$0xff]
  %v53 = vld [vmem:[%s0 + $0x18] sm:$0xff]
  %v54 = vld [vmem:[%s0 + $0x20] sm:$0xff]
  %v55 = vld [vmem:[%s0 + $0x28] sm:$0xff]
  %v56 = vld [vmem:[%s0 + $0x30] sm:$0xff]
  %v57 = vld [vmem:[%s0 + $0x38] sm:$0xff]
  %v58 = vld [vmem:[%s1] sm:$0x1]
  %60 = vset.pattern.permute.xlu0 0
  %61 = vperm.xlu0 %60, %v50
  %v62 = vpop.permute.xlu0 %61
  %65 = vset.pattern.permute.xlu0 0
  %66 = vperm.xlu0 %65, %v51
  %v67 = vpop.permute.xlu0 %66
  %70 = vset.pattern.permute.xlu0 0
  %71 = vperm.xlu0 %70, %v52
  %v72 = vpop.permute.xlu0 %71
  %75 = vset.pattern.permute.xlu0 0
  %76 = vperm.xlu0 %75, %v53
  %v77 = vpop.permute.xlu0 %76
  %80 = vset.pattern.permute.xlu0 0
  %81 = vperm.xlu0 %80, %v54
  %v82 = vpop.permute.xlu0 %81
  %85 = vset.pattern.permute.xlu0 0
  %86 = vperm.xlu0 %85, %v55
  %v87 = vpop.permute.xlu0 %86
  %90 = vset.pattern.permute.xlu0 0
  %91 = vperm.xlu0 %90, %v56
  %v92 = vpop.permute.xlu0 %91
  %95 = vset.pattern.permute.xlu0 0
  %96 = vperm.xlu0 %95, %v57
  %v97 = vpop.permute.xlu0 %96
  %v100 = vperm.slane %v58, 0
  %v102 = vmul.f32 %v62, %v100
  %v103 = vmul.f32 %v67, %v100
  %v104 = vmul.f32 %v72, %v100
  %v105 = vmul.f32 %v77, %v100
  %v106 = vmul.f32 %v82, %v100
  %v107 = vmul.f32 %v87, %v100
  %v108 = vmul.f32 %v92, %v100
  %v109 = vmul.f32 %v97, %v100
  %v110 = vld [vmem:[%s2] sm:$0xff]
  %v111 = vld [vmem:[%s3] sm:$0xff]
  %v112 = vld [vmem:[%s3 + $0x8] sm:$0xff]
  %v113 = vld [vmem:[%s3 + $0x10] sm:$0xff]
  %vm114 = vcmask 261120
  %v116 = vsel %vm114, %v111, 0
  %v119 = vsel %vm114, %v112, 0
  %v122 = vsel %vm114, %v113, 0
  %124 = vmatpush.msra.mxu0 0.0
  %125 = vmatpush.msra.mxu0 0.0
  %126 = vmatpush.msra.mxu0 0.0
  %127 = vmatpush.msra.mxu0 0.0
  %128 = vmatpush.msra.mxu0 0.0
  %129 = vmatpush.msra.mxu0 0.0
  %130 = vmatpush.msra.mxu0 0.0
  %131 = vmatpush.msra.mxu0 0.0
  %132 = vmatpush.msra.mxu0 0.0
  %133 = vmatpush.msra.mxu0 0.0
  %134 = vmatpush.msra.mxu0 0.0
  %135 = vmatpush.msra.mxu0 0.0
  %136 = vmatpush.msra.mxu0 %v105
  %137 = vmatpush.msra.mxu0 %v104
  %138 = vmatpush.msra.mxu0 %v103
  %139 = vmatpush.msra.mxu0 %v102
  %140 = vmatmul.f32.gmra.mxu0 %v116
  %v141 = vpop.f32.mrf.mxu0
  %v142 = vadd.f32 0.0, %v141
  %143 = vmatmul.f32.gmra.mxu0 %v119
  %v144 = vpop.f32.mrf.mxu0
  %v145 = vadd.f32 0.0, %v144
  %146 = vmatmul.f32.gmra.mxu0 %v122
  %v147 = vpop.f32.mrf.mxu0
  %v148 = vadd.f32 0.0, %v147
  %149 = vdwg.mxu0
  %150 = vmatpush.msra.mxu0 0.0
  %151 = vmatpush.msra.mxu0 0.0
  %152 = vmatpush.msra.mxu0 0.0
  %153 = vmatpush.msra.mxu0 0.0
  %154 = vmatpush.msra.mxu0 0.0
  %155 = vmatpush.msra.mxu0 0.0
  %156 = vmatpush.msra.mxu0 0.0
  %157 = vmatpush.msra.mxu0 0.0
  %158 = vmatpush.msra.mxu0 0.0
  %159 = vmatpush.msra.mxu0 0.0
  %160 = vmatpush.msra.mxu0 0.0
  %161 = vmatpush.msra.mxu0 0.0
  %162 = vmatpush.msra.mxu0 %v109
  %163 = vmatpush.msra.mxu0 %v108
  %164 = vmatpush.msra.mxu0 %v107
  %165 = vmatpush.msra.mxu0 %v106
  %166 = vmatmul.f32.gmra.mxu0 %v116
  %v167 = vpop.f32.mrf.mxu0
  %v168 = vadd.f32 0.0, %v167
  %169 = vmatmul.f32.gmra.mxu0 %v119
  %v170 = vpop.f32.mrf.mxu0
  %v171 = vadd.f32 0.0, %v170
  %172 = vmatmul.f32.gmra.mxu0 %v122
  %v173 = vpop.f32.mrf.mxu0
  %v174 = vadd.f32 0.0, %v173
  %175 = vdwg.mxu0
  %v176 = vld [vmem:[%s4] sm:$0xff]
  %v177 = vld [vmem:[%s4 + $0x8] sm:$0xff]
  %v178 = vld [vmem:[%s4 + $0x10] sm:$0xff]
  %v180 = vsel %vm114, %v176, 0
  %v183 = vsel %vm114, %v177, 0
  %v186 = vsel %vm114, %v178, 0
  %188 = vmatpush.msra.mxu0 0.0
  %189 = vmatpush.msra.mxu0 0.0
  %190 = vmatpush.msra.mxu0 0.0
  %191 = vmatpush.msra.mxu0 0.0
  %192 = vmatpush.msra.mxu0 0.0
  %193 = vmatpush.msra.mxu0 0.0
  %194 = vmatpush.msra.mxu0 0.0
  %195 = vmatpush.msra.mxu0 0.0
  %196 = vmatpush.msra.mxu0 0.0
  %197 = vmatpush.msra.mxu0 0.0
  %198 = vmatpush.msra.mxu0 0.0
  %199 = vmatpush.msra.mxu0 0.0
  %200 = vmatpush.msra.mxu0 %v105
  %201 = vmatpush.msra.mxu0 %v104
  %202 = vmatpush.msra.mxu0 %v103
  %203 = vmatpush.msra.mxu0 %v102
  %204 = vmatmul.f32.gmra.mxu0 %v180
  %v205 = vpop.f32.mrf.mxu0
  %v206 = vadd.f32 0.0, %v205
  %207 = vmatmul.f32.gmra.mxu0 %v183
  %v208 = vpop.f32.mrf.mxu0
  %v209 = vadd.f32 0.0, %v208
  %210 = vmatmul.f32.gmra.mxu0 %v186
  %v211 = vpop.f32.mrf.mxu0
  %v212 = vadd.f32 0.0, %v211
  %213 = vdwg.mxu0
  %214 = vmatpush.msra.mxu0 0.0
  %215 = vmatpush.msra.mxu0 0.0
  %216 = vmatpush.msra.mxu0 0.0
  %217 = vmatpush.msra.mxu0 0.0
  %218 = vmatpush.msra.mxu0 0.0
  %219 = vmatpush.msra.mxu0 0.0
  %220 = vmatpush.msra.mxu0 0.0
  %221 = vmatpush.msra.mxu0 0.0
  %222 = vmatpush.msra.mxu0 0.0
  %223 = vmatpush.msra.mxu0 0.0
  %224 = vmatpush.msra.mxu0 0.0
  %225 = vmatpush.msra.mxu0 0.0
  %226 = vmatpush.msra.mxu0 %v109
  %227 = vmatpush.msra.mxu0 %v108
  %228 = vmatpush.msra.mxu0 %v107
  %229 = vmatpush.msra.mxu0 %v106
  %230 = vmatmul.f32.gmra.mxu0 %v180
  %v231 = vpop.f32.mrf.mxu0
  %v232 = vadd.f32 0.0, %v231
  %233 = vmatmul.f32.gmra.mxu0 %v183
  %v234 = vpop.f32.mrf.mxu0
  %v235 = vadd.f32 0.0, %v234
  %236 = vmatmul.f32.gmra.mxu0 %v186
  %v237 = vpop.f32.mrf.mxu0
  %v238 = vadd.f32 0.0, %v237
  %239 = vdwg.mxu0
  %v240 = vperm.slane %v110, 0
  %v241 = vmul.f32 %v142, %v240
  %v242 = vmul.f32 %v145, %v240
  %v243 = vmul.f32 %v148, %v240
  %v244 = vmul.f32 %v168, %v240
  %v245 = vmul.f32 %v171, %v240
  %v246 = vmul.f32 %v174, %v240
  %v247 = vperm.slane %v110, 1
  %v248 = vmul.f32 %v206, %v247
  %v249 = vmul.f32 %v209, %v247
  %v250 = vmul.f32 %v212, %v247
  %v251 = vmul.f32 %v232, %v247
  %v252 = vmul.f32 %v235, %v247
  %v253 = vmul.f32 %v238, %v247
  %v254 = vsub.f32 %v241, %v248
  %v255 = vsub.f32 %v242, %v249
  %v256 = vsub.f32 %v243, %v250
  %v257 = vsub.f32 %v244, %v251
  %v258 = vsub.f32 %v245, %v252
  %v259 = vsub.f32 %v246, %v253
  %v260 = vperm.slane %v110, 2
  %v261 = vadd.f32 %v254, %v260
  %v262 = vadd.f32 %v255, %v260
  %v263 = vadd.f32 %v256, %v260
  %v264 = vadd.f32 %v257, %v260
  %v265 = vadd.f32 %v258, %v260
  %v266 = vadd.f32 %v259, %v260
  %v267 = vmax.f32 %v261, 0.0
  %v268 = vmax.f32 %v262, 0.0
  %v269 = vmax.f32 %v263, 0.0
  %v270 = vmax.f32 %v264, 0.0
  %v271 = vmax.f32 %v265, 0.0
  %v272 = vmax.f32 %v266, 0.0
  %vm273 = vcmp.gt.f32.partialorder %v267, 0.01
  %vm274 = vcmp.gt.f32.partialorder %v268, 0.01
  %vm275 = vcmp.gt.f32.partialorder %v269, 0.01
  %vm276 = vcmp.gt.f32.partialorder %v270, 0.01
  %vm277 = vcmp.gt.f32.partialorder %v271, 0.01
  %vm278 = vcmp.gt.f32.partialorder %v272, 0.01
  %v279 = vsub.f32 %v267, 0.01
  %v280 = vsub.f32 %v268, 0.01
  %v281 = vsub.f32 %v269, 0.01
  %v282 = vsub.f32 %v270, 0.01
  %v283 = vsub.f32 %v271, 0.01
  %v284 = vsub.f32 %v272, 0.01
  %vm285 = vcmp.lt.f32.partialorder %v267, -0.01
  %vm286 = vcmp.lt.f32.partialorder %v268, -0.01
  %vm287 = vcmp.lt.f32.partialorder %v269, -0.01
  %vm288 = vcmp.lt.f32.partialorder %v270, -0.01
  %vm289 = vcmp.lt.f32.partialorder %v271, -0.01
  %vm290 = vcmp.lt.f32.partialorder %v272, -0.01
  %v291 = vadd.f32 %v267, 0.01
  %v292 = vadd.f32 %v268, 0.01
  %v293 = vadd.f32 %v269, 0.01
  %v294 = vadd.f32 %v270, 0.01
  %v295 = vadd.f32 %v271, 0.01
  %v296 = vadd.f32 %v272, 0.01
  %v297 = vsel %vm285, %v291, 0.0
  %v298 = vsel %vm286, %v292, 0.0
  %v299 = vsel %vm287, %v293, 0.0
  %v300 = vsel %vm288, %v294, 0.0
  %v301 = vsel %vm289, %v295, 0.0
  %v302 = vsel %vm290, %v296, 0.0
  %v303 = vsel %vm273, %v279, %v297
  %v304 = vsel %vm274, %v280, %v298
  %v305 = vsel %vm275, %v281, %v299
  %v306 = vsel %vm276, %v282, %v300
  %v307 = vsel %vm277, %v283, %v301
  %v308 = vsel %vm278, %v284, %v302
  %v309 = vmul.f32 %v206, %v240
  %v310 = vmul.f32 %v209, %v240
  %v311 = vmul.f32 %v212, %v240
  %v312 = vmul.f32 %v232, %v240
  %v313 = vmul.f32 %v235, %v240
  %v314 = vmul.f32 %v238, %v240
  %v315 = vmul.f32 %v142, %v247
  %v316 = vmul.f32 %v145, %v247
  %v317 = vmul.f32 %v148, %v247
  %v318 = vmul.f32 %v168, %v247
  %v319 = vmul.f32 %v171, %v247
  %v320 = vmul.f32 %v174, %v247
  %v321 = vadd.f32 %v309, %v315
  %v322 = vadd.f32 %v310, %v316
  %v323 = vadd.f32 %v311, %v317
  %v324 = vadd.f32 %v312, %v318
  %v325 = vadd.f32 %v313, %v319
  %v326 = vadd.f32 %v314, %v320
  %v327 = vperm.slane %v110, 3
  %v328 = vadd.f32 %v321, %v327
  %v329 = vadd.f32 %v322, %v327
  %v330 = vadd.f32 %v323, %v327
  %v331 = vadd.f32 %v324, %v327
  %v332 = vadd.f32 %v325, %v327
  %v333 = vadd.f32 %v326, %v327
  %v334 = vmax.f32 %v328, 0.0
  %v335 = vmax.f32 %v329, 0.0
  %v336 = vmax.f32 %v330, 0.0
  %v337 = vmax.f32 %v331, 0.0
  %v338 = vmax.f32 %v332, 0.0
  %v339 = vmax.f32 %v333, 0.0
  %vm340 = vcmp.gt.f32.partialorder %v334, 0.01
  %vm341 = vcmp.gt.f32.partialorder %v335, 0.01
  %vm342 = vcmp.gt.f32.partialorder %v336, 0.01
  %vm343 = vcmp.gt.f32.partialorder %v337, 0.01
  %vm344 = vcmp.gt.f32.partialorder %v338, 0.01
  %vm345 = vcmp.gt.f32.partialorder %v339, 0.01
  %v346 = vsub.f32 %v334, 0.01
  %v347 = vsub.f32 %v335, 0.01
  %v348 = vsub.f32 %v336, 0.01
  %v349 = vsub.f32 %v337, 0.01
  %v350 = vsub.f32 %v338, 0.01
  %v351 = vsub.f32 %v339, 0.01
  %vm352 = vcmp.lt.f32.partialorder %v334, -0.01
  %vm353 = vcmp.lt.f32.partialorder %v335, -0.01
  %vm354 = vcmp.lt.f32.partialorder %v336, -0.01
  %vm355 = vcmp.lt.f32.partialorder %v337, -0.01
  %vm356 = vcmp.lt.f32.partialorder %v338, -0.01
  %vm357 = vcmp.lt.f32.partialorder %v339, -0.01
  %v358 = vadd.f32 %v334, 0.01
  %v359 = vadd.f32 %v335, 0.01
  %v360 = vadd.f32 %v336, 0.01
  %v361 = vadd.f32 %v337, 0.01
  %v362 = vadd.f32 %v338, 0.01
  %v363 = vadd.f32 %v339, 0.01
  %v364 = vsel %vm352, %v358, 0.0
  %v365 = vsel %vm353, %v359, 0.0
  %v366 = vsel %vm354, %v360, 0.0
  %v367 = vsel %vm355, %v361, 0.0
  %v368 = vsel %vm356, %v362, 0.0
  %v369 = vsel %vm357, %v363, 0.0
  %v370 = vsel %vm340, %v346, %v364
  %v371 = vsel %vm341, %v347, %v365
  %v372 = vsel %vm342, %v348, %v366
  %v373 = vsel %vm343, %v349, %v367
  %v374 = vsel %vm344, %v350, %v368
  %v375 = vsel %vm345, %v351, %v369
  %v376 = vld [vmem:[%s5] sm:$0xff]
  %v377 = vld [vmem:[%s5 + $0x8] sm:$0xff]
  %v378 = vld [vmem:[%s5 + $0x10] sm:$0xff]
  %v379 = vld [vmem:[%s5 + $0x18] sm:$0xff]
  %v380 = vld [vmem:[%s6] sm:$0xff]
  %v381 = vld [vmem:[%s6 + $0x8] sm:$0xff]
  %v382 = vld [vmem:[%s6 + $0x10] sm:$0xff]
  %v383 = vld [vmem:[%s6 + $0x18] sm:$0xff]
  %vm384 = vcmask 195584
  %v386 = vsel %vm384, %v380, 0
  %v389 = vsel %vm384, %v381, 0
  %v392 = vsel %vm384, %v382, 0
  %v395 = vsel %vm384, %v383, 0
  %397 = vmatpush.msra.mxu0 0.0
  %398 = vmatpush.msra.mxu0 0.0
  %399 = vmatpush.msra.mxu0 0.0
  %400 = vmatpush.msra.mxu0 0.0
  %401 = vmatpush.msra.mxu0 0.0
  %402 = vmatpush.msra.mxu0 0.0
  %403 = vmatpush.msra.mxu0 0.0
  %404 = vmatpush.msra.mxu0 0.0
  %405 = vmatpush.msra.mxu0 0.0
  %406 = vmatpush.msra.mxu0 0.0
  %407 = vmatpush.msra.mxu0 0.0
  %408 = vmatpush.msra.mxu0 0.0
  %409 = vmatpush.msra.mxu0 0.0
  %410 = vmatpush.msra.mxu0 %v372
  %411 = vmatpush.msra.mxu0 %v371
  %412 = vmatpush.msra.mxu0 %v370
  %413 = vmatmul.f32.gmra.mxu0 %v386
  %v414 = vpop.f32.mrf.mxu0
  %v415 = vadd.f32 0.0, %v414
  %416 = vmatmul.f32.gmra.mxu0 %v389
  %v417 = vpop.f32.mrf.mxu0
  %v418 = vadd.f32 0.0, %v417
  %419 = vmatmul.f32.gmra.mxu0 %v392
  %v420 = vpop.f32.mrf.mxu0
  %v421 = vadd.f32 0.0, %v420
  %422 = vmatmul.f32.gmra.mxu0 %v395
  %v423 = vpop.f32.mrf.mxu0
  %v424 = vadd.f32 0.0, %v423
  %425 = vdwg.mxu0
  %426 = vmatpush.msra.mxu0 0.0
  %427 = vmatpush.msra.mxu0 0.0
  %428 = vmatpush.msra.mxu0 0.0
  %429 = vmatpush.msra.mxu0 0.0
  %430 = vmatpush.msra.mxu0 0.0
  %431 = vmatpush.msra.mxu0 0.0
  %432 = vmatpush.msra.mxu0 0.0
  %433 = vmatpush.msra.mxu0 0.0
  %434 = vmatpush.msra.mxu0 0.0
  %435 = vmatpush.msra.mxu0 0.0
  %436 = vmatpush.msra.mxu0 0.0
  %437 = vmatpush.msra.mxu0 0.0
  %438 = vmatpush.msra.mxu0 0.0
  %439 = vmatpush.msra.mxu0 %v375
  %440 = vmatpush.msra.mxu0 %v374
  %441 = vmatpush.msra.mxu0 %v373
  %442 = vmatmul.f32.gmra.mxu0 %v386
  %v443 = vpop.f32.mrf.mxu0
  %v444 = vadd.f32 0.0, %v443
  %445 = vmatmul.f32.gmra.mxu0 %v389
  %v446 = vpop.f32.mrf.mxu0
  %v447 = vadd.f32 0.0, %v446
  %448 = vmatmul.f32.gmra.mxu0 %v392
  %v449 = vpop.f32.mrf.mxu0
  %v450 = vadd.f32 0.0, %v449
  %451 = vmatmul.f32.gmra.mxu0 %v395
  %v452 = vpop.f32.mrf.mxu0
  %v453 = vadd.f32 0.0, %v452
  %454 = vdwg.mxu0
  %v456 = vsel %vm384, %v376, 0
  %v459 = vsel %vm384, %v377, 0
  %v462 = vsel %vm384, %v378, 0
  %v465 = vsel %vm384, %v379, 0
  %467 = vmatpush.msra.mxu0 0.0
  %468 = vmatpush.msra.mxu0 0.0
  %469 = vmatpush.msra.mxu0 0.0
  %470 = vmatpush.msra.mxu0 0.0
  %471 = vmatpush.msra.mxu0 0.0
  %472 = vmatpush.msra.mxu0 0.0
  %473 = vmatpush.msra.mxu0 0.0
  %474 = vmatpush.msra.mxu0 0.0
  %475 = vmatpush.msra.mxu0 0.0
  %476 = vmatpush.msra.mxu0 0.0
  %477 = vmatpush.msra.mxu0 0.0
  %478 = vmatpush.msra.mxu0 0.0
  %479 = vmatpush.msra.mxu0 0.0
  %480 = vmatpush.msra.mxu0 %v305
  %481 = vmatpush.msra.mxu0 %v304
  %482 = vmatpush.msra.mxu0 %v303
  %483 = vmatmul.f32.gmra.mxu0 %v456
  %v484 = vpop.f32.mrf.mxu0
  %v485 = vadd.f32 %v415, %v484
  %486 = vmatmul.f32.gmra.mxu0 %v459
  %v487 = vpop.f32.mrf.mxu0
  %v488 = vadd.f32 %v418, %v487
  %489 = vmatmul.f32.gmra.mxu0 %v462
  %v490 = vpop.f32.mrf.mxu0
  %v491 = vadd.f32 %v421, %v490
  %492 = vmatmul.f32.gmra.mxu0 %v465
  %v493 = vpop.f32.mrf.mxu0
  %v494 = vadd.f32 %v424, %v493
  %495 = vdwg.mxu0
  %496 = vmatpush.msra.mxu0 0.0
  %497 = vmatpush.msra.mxu0 0.0
  %498 = vmatpush.msra.mxu0 0.0
  %499 = vmatpush.msra.mxu0 0.0
  %500 = vmatpush.msra.mxu0 0.0
  %501 = vmatpush.msra.mxu0 0.0
  %502 = vmatpush.msra.mxu0 0.0
  %503 = vmatpush.msra.mxu0 0.0
  %504 = vmatpush.msra.mxu0 0.0
  %505 = vmatpush.msra.mxu0 0.0
  %506 = vmatpush.msra.mxu0 0.0
  %507 = vmatpush.msra.mxu0 0.0
  %508 = vmatpush.msra.mxu0 0.0
  %509 = vmatpush.msra.mxu0 %v308
  %510 = vmatpush.msra.mxu0 %v307
  %511 = vmatpush.msra.mxu0 %v306
  %512 = vmatmul.f32.gmra.mxu0 %v456
  %v513 = vpop.f32.mrf.mxu0
  %v514 = vadd.f32 %v444, %v513
  %515 = vmatmul.f32.gmra.mxu0 %v459
  %v516 = vpop.f32.mrf.mxu0
  %v517 = vadd.f32 %v447, %v516
  %518 = vmatmul.f32.gmra.mxu0 %v462
  %v519 = vpop.f32.mrf.mxu0
  %v520 = vadd.f32 %v450, %v519
  %521 = vmatmul.f32.gmra.mxu0 %v465
  %v522 = vpop.f32.mrf.mxu0
  %v523 = vadd.f32 %v453, %v522
  %524 = vdwg.mxu0
  %v525 = vld [vmem:[%s7] sm:$0xff]
  %v526 = vld [vmem:[%s7 + $0x8] sm:$0xff]
  %v527 = vld [vmem:[%s7 + $0x10] sm:$0xf]
  %v529 = vsel %vm114, %v525, 0
  %v532 = vsel %vm114, %v526, 0
  %v535 = vsel %vm114, %v527, 0
  %537 = vmatpush.msra.mxu0 0.0
  %538 = vmatpush.msra.mxu0 0.0
  %539 = vmatpush.msra.mxu0 0.0
  %540 = vmatpush.msra.mxu0 0.0
  %541 = vmatpush.msra.mxu0 0.0
  %542 = vmatpush.msra.mxu0 0.0
  %543 = vmatpush.msra.mxu0 0.0
  %544 = vmatpush.msra.mxu0 0.0
  %545 = vmatpush.msra.mxu0 0.0
  %546 = vmatpush.msra.mxu0 0.0
  %547 = vmatpush.msra.mxu0 0.0
  %548 = vmatpush.msra.mxu0 0.0
  %549 = vmatpush.msra.mxu0 %v494
  %550 = vmatpush.msra.mxu0 %v491
  %551 = vmatpush.msra.mxu0 %v488
  %552 = vmatpush.msra.mxu0 %v485
  %553 = vmatmul.f32.gmra.mxu0 %v529
  %v554 = vpop.f32.mrf.mxu0
  %v555 = vadd.f32 0.0, %v554
  %556 = vmatmul.f32.gmra.mxu0 %v532
  %v557 = vpop.f32.mrf.mxu0
  %v558 = vadd.f32 0.0, %v557
  %559 = vmatmul.f32.gmra.mxu0 %v535
  %v560 = vpop.f32.mrf.mxu0
  %v561 = vadd.f32 0.0, %v560
  %562 = vdwg.mxu0
  %563 = vmatpush.msra.mxu0 0.0
  %564 = vmatpush.msra.mxu0 0.0
  %565 = vmatpush.msra.mxu0 0.0
  %566 = vmatpush.msra.mxu0 0.0
  %567 = vmatpush.msra.mxu0 0.0
  %568 = vmatpush.msra.mxu0 0.0
  %569 = vmatpush.msra.mxu0 0.0
  %570 = vmatpush.msra.mxu0 0.0
  %571 = vmatpush.msra.mxu0 0.0
  %572 = vmatpush.msra.mxu0 0.0
  %573 = vmatpush.msra.mxu0 0.0
  %574 = vmatpush.msra.mxu0 0.0
  %575 = vmatpush.msra.mxu0 %v523
  %576 = vmatpush.msra.mxu0 %v520
  %577 = vmatpush.msra.mxu0 %v517
  %578 = vmatpush.msra.mxu0 %v514
  %579 = vmatmul.f32.gmra.mxu0 %v529
  %v580 = vpop.f32.mrf.mxu0
  %v581 = vadd.f32 0.0, %v580
  %582 = vmatmul.f32.gmra.mxu0 %v532
  %v583 = vpop.f32.mrf.mxu0
  %v584 = vadd.f32 0.0, %v583
  %585 = vmatmul.f32.gmra.mxu0 %v535
  %v586 = vpop.f32.mrf.mxu0
  %v587 = vadd.f32 0.0, %v586
  %588 = vdwg.mxu0
  %v589 = vld [vmem:[%s8] sm:$0xff]
  %v590 = vld [vmem:[%s8 + $0x8] sm:$0xff]
  %v591 = vld [vmem:[%s8 + $0x10] sm:$0xf]
  %v593 = vsel %vm114, %v589, 0
  %v596 = vsel %vm114, %v590, 0
  %v599 = vsel %vm114, %v591, 0
  %601 = vmatpush.msra.mxu0 0.0
  %602 = vmatpush.msra.mxu0 0.0
  %603 = vmatpush.msra.mxu0 0.0
  %604 = vmatpush.msra.mxu0 0.0
  %605 = vmatpush.msra.mxu0 0.0
  %606 = vmatpush.msra.mxu0 0.0
  %607 = vmatpush.msra.mxu0 0.0
  %608 = vmatpush.msra.mxu0 0.0
  %609 = vmatpush.msra.mxu0 0.0
  %610 = vmatpush.msra.mxu0 0.0
  %611 = vmatpush.msra.mxu0 0.0
  %612 = vmatpush.msra.mxu0 0.0
  %613 = vmatpush.msra.mxu0 %v494
  %614 = vmatpush.msra.mxu0 %v491
  %615 = vmatpush.msra.mxu0 %v488
  %616 = vmatpush.msra.mxu0 %v485
  %617 = vmatmul.f32.gmra.mxu0 %v593
  %v618 = vpop.f32.mrf.mxu0
  %v619 = vadd.f32 0.0, %v618
  %620 = vmatmul.f32.gmra.mxu0 %v596
  %v621 = vpop.f32.mrf.mxu0
  %v622 = vadd.f32 0.0, %v621
  %623 = vmatmul.f32.gmra.mxu0 %v599
  %v624 = vpop.f32.mrf.mxu0
  %v625 = vadd.f32 0.0, %v624
  %626 = vdwg.mxu0
  %627 = vmatpush.msra.mxu0 0.0
  %628 = vmatpush.msra.mxu0 0.0
  %629 = vmatpush.msra.mxu0 0.0
  %630 = vmatpush.msra.mxu0 0.0
  %631 = vmatpush.msra.mxu0 0.0
  %632 = vmatpush.msra.mxu0 0.0
  %633 = vmatpush.msra.mxu0 0.0
  %634 = vmatpush.msra.mxu0 0.0
  %635 = vmatpush.msra.mxu0 0.0
  %636 = vmatpush.msra.mxu0 0.0
  %637 = vmatpush.msra.mxu0 0.0
  %638 = vmatpush.msra.mxu0 0.0
  %639 = vmatpush.msra.mxu0 %v523
  %640 = vmatpush.msra.mxu0 %v520
  %641 = vmatpush.msra.mxu0 %v517
  %642 = vmatpush.msra.mxu0 %v514
  %643 = vmatmul.f32.gmra.mxu0 %v593
  %v644 = vpop.f32.mrf.mxu0
  %v645 = vadd.f32 0.0, %v644
  %646 = vmatmul.f32.gmra.mxu0 %v596
  %v647 = vpop.f32.mrf.mxu0
  %v648 = vadd.f32 0.0, %v647
  %649 = vmatmul.f32.gmra.mxu0 %v599
  %v650 = vpop.f32.mrf.mxu0
  %v651 = vadd.f32 0.0, %v650
  %652 = vdwg.mxu0
  %v653 = vperm.slane %v110, 4
  %v654 = vmul.f32 %v555, %v653
  %v655 = vmul.f32 %v558, %v653
  %v656 = vmul.f32 %v561, %v653
  %v657 = vmul.f32 %v581, %v653
  %v658 = vmul.f32 %v584, %v653
  %v659 = vmul.f32 %v587, %v653
  %v660 = vperm.slane %v110, 5
  %v661 = vmul.f32 %v619, %v660
  %v662 = vmul.f32 %v622, %v660
  %v663 = vmul.f32 %v625, %v660
  %v664 = vmul.f32 %v645, %v660
  %v665 = vmul.f32 %v648, %v660
  %v666 = vmul.f32 %v651, %v660
  %v667 = vsub.f32 %v654, %v661
  %v668 = vsub.f32 %v655, %v662
  %v669 = vsub.f32 %v656, %v663
  %v670 = vsub.f32 %v657, %v664
  %v671 = vsub.f32 %v658, %v665
  %v672 = vsub.f32 %v659, %v666
  %v673 = vperm.slane %v110, 6
  %v674 = vadd.f32 %v667, %v673
  %v675 = vadd.f32 %v668, %v673
  %v676 = vadd.f32 %v669, %v673
  %v677 = vadd.f32 %v670, %v673
  %v678 = vadd.f32 %v671, %v673
  %v679 = vadd.f32 %v672, %v673
  %v680 = vmax.f32 %v674, 0.0
  %v681 = vmax.f32 %v675, 0.0
  %v682 = vmax.f32 %v676, 0.0
  %v683 = vmax.f32 %v677, 0.0
  %v684 = vmax.f32 %v678, 0.0
  %v685 = vmax.f32 %v679, 0.0
  %vm686 = vcmp.gt.f32.partialorder %v680, 0.01
  %vm687 = vcmp.gt.f32.partialorder %v681, 0.01
  %vm688 = vcmp.gt.f32.partialorder %v682, 0.01
  %vm689 = vcmp.gt.f32.partialorder %v683, 0.01
  %vm690 = vcmp.gt.f32.partialorder %v684, 0.01
  %vm691 = vcmp.gt.f32.partialorder %v685, 0.01
  %v692 = vsub.f32 %v680, 0.01
  %v693 = vsub.f32 %v681, 0.01
  %v694 = vsub.f32 %v682, 0.01
  %v695 = vsub.f32 %v683, 0.01
  %v696 = vsub.f32 %v684, 0.01
  %v697 = vsub.f32 %v685, 0.01
  %vm698 = vcmp.lt.f32.partialorder %v680, -0.01
  %vm699 = vcmp.lt.f32.partialorder %v681, -0.01
  %vm700 = vcmp.lt.f32.partialorder %v682, -0.01
  %vm701 = vcmp.lt.f32.partialorder %v683, -0.01
  %vm702 = vcmp.lt.f32.partialorder %v684, -0.01
  %vm703 = vcmp.lt.f32.partialorder %v685, -0.01
  %v704 = vadd.f32 %v680, 0.01
  %v705 = vadd.f32 %v681, 0.01
  %v706 = vadd.f32 %v682, 0.01
  %v707 = vadd.f32 %v683, 0.01
  %v708 = vadd.f32 %v684, 0.01
  %v709 = vadd.f32 %v685, 0.01
  %v710 = vsel %vm698, %v704, 0.0
  %v711 = vsel %vm699, %v705, 0.0
  %v712 = vsel %vm700, %v706, 0.0
  %v713 = vsel %vm701, %v707, 0.0
  %v714 = vsel %vm702, %v708, 0.0
  %v715 = vsel %vm703, %v709, 0.0
  %v716 = vsel %vm686, %v692, %v710
  %v717 = vsel %vm687, %v693, %v711
  %v718 = vsel %vm688, %v694, %v712
  %v719 = vsel %vm689, %v695, %v713
  %v720 = vsel %vm690, %v696, %v714
  %v721 = vsel %vm691, %v697, %v715
  %v722 = vmul.f32 %v619, %v653
  %v723 = vmul.f32 %v622, %v653
  %v724 = vmul.f32 %v625, %v653
  %v725 = vmul.f32 %v645, %v653
  %v726 = vmul.f32 %v648, %v653
  %v727 = vmul.f32 %v651, %v653
  %v728 = vmul.f32 %v555, %v660
  %v729 = vmul.f32 %v558, %v660
  %v730 = vmul.f32 %v561, %v660
  %v731 = vmul.f32 %v581, %v660
  %v732 = vmul.f32 %v584, %v660
  %v733 = vmul.f32 %v587, %v660
  %v734 = vadd.f32 %v722, %v728
  %v735 = vadd.f32 %v723, %v729
  %v736 = vadd.f32 %v724, %v730
  %v737 = vadd.f32 %v725, %v731
  %v738 = vadd.f32 %v726, %v732
  %v739 = vadd.f32 %v727, %v733
  %v740 = vperm.slane %v110, 7
  %v741 = vadd.f32 %v734, %v740
  %v742 = vadd.f32 %v735, %v740
  %v743 = vadd.f32 %v736, %v740
  %v744 = vadd.f32 %v737, %v740
  %v745 = vadd.f32 %v738, %v740
  %v746 = vadd.f32 %v739, %v740
  %v747 = vmax.f32 %v741, 0.0
  %v748 = vmax.f32 %v742, 0.0
  %v749 = vmax.f32 %v743, 0.0
  %v750 = vmax.f32 %v744, 0.0
  %v751 = vmax.f32 %v745, 0.0
  %v752 = vmax.f32 %v746, 0.0
  %vm753 = vcmp.gt.f32.partialorder %v747, 0.01
  %vm754 = vcmp.gt.f32.partialorder %v748, 0.01
  %vm755 = vcmp.gt.f32.partialorder %v749, 0.01
  %vm756 = vcmp.gt.f32.partialorder %v750, 0.01
  %vm757 = vcmp.gt.f32.partialorder %v751, 0.01
  %vm758 = vcmp.gt.f32.partialorder %v752, 0.01
  %v759 = vsub.f32 %v747, 0.01
  %v760 = vsub.f32 %v748, 0.01
  %v761 = vsub.f32 %v749, 0.01
  %v762 = vsub.f32 %v750, 0.01
  %v763 = vsub.f32 %v751, 0.01
  %v764 = vsub.f32 %v752, 0.01
  %vm765 = vcmp.lt.f32.partialorder %v747, -0.01
  %vm766 = vcmp.lt.f32.partialorder %v748, -0.01
  %vm767 = vcmp.lt.f32.partialorder %v749, -0.01
  %vm768 = vcmp.lt.f32.partialorder %v750, -0.01
  %vm769 = vcmp.lt.f32.partialorder %v751, -0.01
  %vm770 = vcmp.lt.f32.partialorder %v752, -0.01
  %v771 = vadd.f32 %v747, 0.01
  %v772 = vadd.f32 %v748, 0.01
  %v773 = vadd.f32 %v749, 0.01
  %v774 = vadd.f32 %v750, 0.01
  %v775 = vadd.f32 %v751, 0.01
  %v776 = vadd.f32 %v752, 0.01
  %v777 = vsel %vm765, %v771, 0.0
  %v778 = vsel %vm766, %v772, 0.0
  %v779 = vsel %vm767, %v773, 0.0
  %v780 = vsel %vm768, %v774, 0.0
  %v781 = vsel %vm769, %v775, 0.0
  %v782 = vsel %vm770, %v776, 0.0
  %v783 = vsel %vm753, %v759, %v777
  %v784 = vsel %vm754, %v760, %v778
  %v785 = vsel %vm755, %v761, %v779
  %v786 = vsel %vm756, %v762, %v780
  %v787 = vsel %vm757, %v763, %v781
  %v788 = vsel %vm758, %v764, %v782
  %v789 = vld [vmem:[%s9] sm:$0xff]
  %v790 = vld [vmem:[%s9 + $0x8] sm:$0xff]
  %v791 = vld [vmem:[%s9 + $0x10] sm:$0xff]
  %v792 = vld [vmem:[%s9 + $0x18] sm:$0xff]
  %v793 = vld [vmem:[%s10] sm:$0xff]
  %v794 = vld [vmem:[%s10 + $0x8] sm:$0xff]
  %v795 = vld [vmem:[%s10 + $0x10] sm:$0xff]
  %v796 = vld [vmem:[%s10 + $0x18] sm:$0xff]
  %vm797 = vcmask 162816
  %v799 = vsel %vm797, %v793, 0
  %v802 = vsel %vm797, %v794, 0
  %v805 = vsel %vm797, %v795, 0
  %v808 = vsel %vm797, %v796, 0
  %vm810 = vcmask 1043456
  %v812 = vsel %vm810, %v785, 0
  %814 = vmatpush.msra.mxu0 0.0
  %815 = vmatpush.msra.mxu0 0.0
  %816 = vmatpush.msra.mxu0 0.0
  %817 = vmatpush.msra.mxu0 0.0
  %818 = vmatpush.msra.mxu0 0.0
  %819 = vmatpush.msra.mxu0 0.0
  %820 = vmatpush.msra.mxu0 0.0
  %821 = vmatpush.msra.mxu0 0.0
  %822 = vmatpush.msra.mxu0 0.0
  %823 = vmatpush.msra.mxu0 0.0
  %824 = vmatpush.msra.mxu0 0.0
  %825 = vmatpush.msra.mxu0 0.0
  %826 = vmatpush.msra.mxu0 0.0
  %827 = vmatpush.msra.mxu0 %v812
  %828 = vmatpush.msra.mxu0 %v784
  %829 = vmatpush.msra.mxu0 %v783
  %830 = vmatmul.f32.gmra.mxu0 %v799
  %v831 = vpop.f32.mrf.mxu0
  %v832 = vadd.f32 0.0, %v831
  %833 = vmatmul.f32.gmra.mxu0 %v802
  %v834 = vpop.f32.mrf.mxu0
  %v835 = vadd.f32 0.0, %v834
  %836 = vmatmul.f32.gmra.mxu0 %v805
  %v837 = vpop.f32.mrf.mxu0
  %v838 = vadd.f32 0.0, %v837
  %839 = vmatmul.f32.gmra.mxu0 %v808
  %v840 = vpop.f32.mrf.mxu0
  %v841 = vadd.f32 0.0, %v840
  %842 = vdwg.mxu0
  %v844 = vsel %vm810, %v788, 0
  %846 = vmatpush.msra.mxu0 0.0
  %847 = vmatpush.msra.mxu0 0.0
  %848 = vmatpush.msra.mxu0 0.0
  %849 = vmatpush.msra.mxu0 0.0
  %850 = vmatpush.msra.mxu0 0.0
  %851 = vmatpush.msra.mxu0 0.0
  %852 = vmatpush.msra.mxu0 0.0
  %853 = vmatpush.msra.mxu0 0.0
  %854 = vmatpush.msra.mxu0 0.0
  %855 = vmatpush.msra.mxu0 0.0
  %856 = vmatpush.msra.mxu0 0.0
  %857 = vmatpush.msra.mxu0 0.0
  %858 = vmatpush.msra.mxu0 0.0
  %859 = vmatpush.msra.mxu0 %v844
  %860 = vmatpush.msra.mxu0 %v787
  %861 = vmatpush.msra.mxu0 %v786
  %862 = vmatmul.f32.gmra.mxu0 %v799
  %v863 = vpop.f32.mrf.mxu0
  %v864 = vadd.f32 0.0, %v863
  %865 = vmatmul.f32.gmra.mxu0 %v802
  %v866 = vpop.f32.mrf.mxu0
  %v867 = vadd.f32 0.0, %v866
  %868 = vmatmul.f32.gmra.mxu0 %v805
  %v869 = vpop.f32.mrf.mxu0
  %v870 = vadd.f32 0.0, %v869
  %871 = vmatmul.f32.gmra.mxu0 %v808
  %v872 = vpop.f32.mrf.mxu0
  %v873 = vadd.f32 0.0, %v872
  %874 = vdwg.mxu0
  %v876 = vsel %vm797, %v789, 0
  %v879 = vsel %vm797, %v790, 0
  %v882 = vsel %vm797, %v791, 0
  %v885 = vsel %vm797, %v792, 0
  %v888 = vsel %vm810, %v718, 0
  %890 = vmatpush.msra.mxu0 0.0
  %891 = vmatpush.msra.mxu0 0.0
  %892 = vmatpush.msra.mxu0 0.0
  %893 = vmatpush.msra.mxu0 0.0
  %894 = vmatpush.msra.mxu0 0.0
  %895 = vmatpush.msra.mxu0 0.0
  %896 = vmatpush.msra.mxu0 0.0
  %897 = vmatpush.msra.mxu0 0.0
  %898 = vmatpush.msra.mxu0 0.0
  %899 = vmatpush.msra.mxu0 0.0
  %900 = vmatpush.msra.mxu0 0.0
  %901 = vmatpush.msra.mxu0 0.0
  %902 = vmatpush.msra.mxu0 0.0
  %903 = vmatpush.msra.mxu0 %v888
  %904 = vmatpush.msra.mxu0 %v717
  %905 = vmatpush.msra.mxu0 %v716
  %906 = vmatmul.f32.gmra.mxu0 %v876
  %v907 = vpop.f32.mrf.mxu0
  %v908 = vadd.f32 %v832, %v907
  %909 = vmatmul.f32.gmra.mxu0 %v879
  %v910 = vpop.f32.mrf.mxu0
  %v911 = vadd.f32 %v835, %v910
  %912 = vmatmul.f32.gmra.mxu0 %v882
  %v913 = vpop.f32.mrf.mxu0
  %v914 = vadd.f32 %v838, %v913
  %915 = vmatmul.f32.gmra.mxu0 %v885
  %v916 = vpop.f32.mrf.mxu0
  %v917 = vadd.f32 %v841, %v916
  %918 = vdwg.mxu0
  %v920 = vsel %vm810, %v721, 0
  %922 = vmatpush.msra.mxu0 0.0
  %923 = vmatpush.msra.mxu0 0.0
  %924 = vmatpush.msra.mxu0 0.0
  %925 = vmatpush.msra.mxu0 0.0
  %926 = vmatpush.msra.mxu0 0.0
  %927 = vmatpush.msra.mxu0 0.0
  %928 = vmatpush.msra.mxu0 0.0
  %929 = vmatpush.msra.mxu0 0.0
  %930 = vmatpush.msra.mxu0 0.0
  %931 = vmatpush.msra.mxu0 0.0
  %932 = vmatpush.msra.mxu0 0.0
  %933 = vmatpush.msra.mxu0 0.0
  %934 = vmatpush.msra.mxu0 0.0
  %935 = vmatpush.msra.mxu0 %v920
  %936 = vmatpush.msra.mxu0 %v720
  %937 = vmatpush.msra.mxu0 %v719
  %938 = vmatmul.f32.gmra.mxu0 %v876
  %v939 = vpop.f32.mrf.mxu0
  %v940 = vadd.f32 %v864, %v939
  %941 = vmatmul.f32.gmra.mxu0 %v879
  %v942 = vpop.f32.mrf.mxu0
  %v943 = vadd.f32 %v867, %v942
  %944 = vmatmul.f32.gmra.mxu0 %v882
  %v945 = vpop.f32.mrf.mxu0
  %v946 = vadd.f32 %v870, %v945
  %947 = vmatmul.f32.gmra.mxu0 %v885
  %v948 = vpop.f32.mrf.mxu0
  %v949 = vadd.f32 %v873, %v948
  %950 = vdwg.mxu0
  %v951 = vadd.f32 %v908, %v102
  %v952 = vadd.f32 %v911, %v103
  %v953 = vadd.f32 %v914, %v104
  %v954 = vadd.f32 %v917, %v105
  %v955 = vadd.f32 %v940, %v106
  %v956 = vadd.f32 %v943, %v107
  %v957 = vadd.f32 %v946, %v108
  %v958 = vadd.f32 %v949, %v109
  %967 = vst [vmem:[#allocation1] ss:$9 sm:$0xff] %v951
  %s968 = scalar_lea.vmem [#allocation1], 1
  %969 = vst [vmem:[%s968] ss:$9 sm:$0xff] %v952
  %s970 = scalar_lea.vmem [#allocation1], 2
  %971 = vst [vmem:[%s970] ss:$9 sm:$0xff] %v953
  %s972 = scalar_lea.vmem [#allocation1], 3
  %973 = vst [vmem:[%s972] ss:$9 sm:$0xff] %v954
  %s974 = scalar_lea.vmem [#allocation1], 4
  %975 = vst [vmem:[%s974] ss:$9 sm:$0xff] %v955
  %s976 = scalar_lea.vmem [#allocation1], 5
  %977 = vst [vmem:[%s976] ss:$9 sm:$0xff] %v956
  %s978 = scalar_lea.vmem [#allocation1], 6
  %979 = vst [vmem:[%s978] ss:$9 sm:$0xff] %v957
  %s980 = scalar_lea.vmem [#allocation1], 7
  %981 = vst [vmem:[%s980] ss:$9 sm:$0xff] %v958
  %v982 = vld [vmem:[#allocation1] sm:$0xff]
  %v983 = vld [vmem:[#allocation1 + $0x9] sm:$0xff]
  %v984 = vld [vmem:[#allocation1 + $0x12] sm:$0xff]
  %v985 = vld [vmem:[#allocation1 + $0x1b] sm:$0xff]
  %v986 = vld [vmem:[#allocation1 + $0x24] sm:$0xff]
  %v987 = vld [vmem:[#allocation1 + $0x2d] sm:$0xff]
  %v988 = vld [vmem:[#allocation1 + $0x36] sm:$0xff]
  %v989 = vld [vmem:[#allocation1 + $0x3f] sm:$0xff]
  %v998 = vpack.c.bf16 %v982, %v982
  %v999 = vpack.c.bf16 %v983, %v983
  %v1000 = vpack.c.bf16 %v984, %v984
  %v1001 = vpack.c.bf16 %v985, %v985
  %v1002 = vpack.c.bf16 %v986, %v986
  %v1003 = vpack.c.bf16 %v987, %v987
  %v1004 = vpack.c.bf16 %v988, %v988
  %v1005 = vpack.c.bf16 %v989, %v989
  %v1006 = vld [vmem:[%s11] sm:$0xff]
  %v1007 = vld [vmem:[%s11 + $0x8] sm:$0xff]
  %v1008 = vld [vmem:[%s11 + $0x10] sm:$0xff]
  %v1009 = vld [vmem:[%s11 + $0x18] sm:$0xff]
  %v1010 = vld [vmem:[%s11 + $0x20] sm:$0xff]
  %v1011 = vld [vmem:[%s11 + $0x28] sm:$0xff]
  %v1012 = vld [vmem:[%s11 + $0x30] sm:$0xff]
  %v1013 = vld [vmem:[%s11 + $0x38] sm:$0xff]
  %v1014 = vld [vmem:[%s11 + $0x40] sm:$0xff]
  %v1015 = vld [vmem:[%s11 + $0x48] sm:$0xff]
  %v1016 = vld [vmem:[%s11 + $0x50] sm:$0xff]
  %v1017 = vld [vmem:[%s11 + $0x58] sm:$0xff]
  %v1018 = vld [vmem:[%s11 + $0x60] sm:$0xff]
  %v1019 = vld [vmem:[%s11 + $0x68] sm:$0xff]
  %v1020 = vld [vmem:[%s11 + $0x70] sm:$0xff]
  %v1021 = vld [vmem:[%s11 + $0x78] sm:$0xff]
  %v1022 = vld [vmem:[%s11 + $0x80] sm:$0xff]
  %v1023 = vld [vmem:[%s11 + $0x88] sm:$0xff]
  %v1024 = vld [vmem:[%s11 + $0x90] sm:$0xff]
  %v1025 = vld [vmem:[%s11 + $0x98] sm:$0xff]
  %v1026 = vld [vmem:[%s11 + $0xa0] sm:$0xff]
  %v1027 = vld [vmem:[%s11 + $0xa8] sm:$0xff]
  %v1028 = vld [vmem:[%s11 + $0xb0] sm:$0xff]
  %v1029 = vld [vmem:[%s11 + $0xb8] sm:$0xff]
  %v1030 = vld [vmem:[%s11 + $0xc0] sm:$0xff]
  %v1031 = vld [vmem:[%s11 + $0xc8] sm:$0xff]
  %v1032 = vld [vmem:[%s11 + $0xd0] sm:$0xff]
  %v1033 = vld [vmem:[%s11 + $0xd8] sm:$0xff]
  %v1034 = vld [vmem:[%s11 + $0xe0] sm:$0xff]
  %v1035 = vld [vmem:[%s11 + $0xe8] sm:$0xff]
  %v1036 = vld [vmem:[%s11 + $0xf0] sm:$0xff]
  %v1037 = vld [vmem:[%s11 + $0xf8] sm:$0xff]
  %v1038 = vld [vmem:[%s11 + $0x100] sm:$0xff]
  %v1039 = vld [vmem:[%s11 + $0x108] sm:$0xff]
  %v1040 = vld [vmem:[%s11 + $0x110] sm:$0xff]
  %v1041 = vld [vmem:[%s11 + $0x118] sm:$0xff]
  %v1042 = vld [vmem:[%s11 + $0x120] sm:$0xff]
  %v1043 = vld [vmem:[%s11 + $0x128] sm:$0xff]
  %v1044 = vld [vmem:[%s11 + $0x130] sm:$0xff]
  %v1045 = vld [vmem:[%s11 + $0x138] sm:$0xff]
  %v1046 = vld [vmem:[%s11 + $0x140] sm:$0xff]
  %v1047 = vld [vmem:[%s11 + $0x148] sm:$0xff]
  %v1048 = vld [vmem:[%s11 + $0x150] sm:$0xff]
  %v1049 = vld [vmem:[%s11 + $0x158] sm:$0xff]
  %v1050 = vld [vmem:[%s11 + $0x160] sm:$0xff]
  %v1051 = vld [vmem:[%s11 + $0x168] sm:$0xff]
  %v1052 = vld [vmem:[%s11 + $0x170] sm:$0xff]
  %v1053 = vld [vmem:[%s11 + $0x178] sm:$0xff]
  %v1054 = vld [vmem:[%s11 + $0x180] sm:$0xff]
  %v1055 = vld [vmem:[%s11 + $0x188] sm:$0xff]
  %v1056 = vld [vmem:[%s11 + $0x190] sm:$0xff]
  %v1057 = vld [vmem:[%s11 + $0x198] sm:$0xff]
  %v1058 = vld [vmem:[%s11 + $0x1a0] sm:$0xff]
  %v1059 = vld [vmem:[%s11 + $0x1a8] sm:$0xff]
  %v1060 = vld [vmem:[%s11 + $0x1b0] sm:$0xff]
  %v1061 = vld [vmem:[%s11 + $0x1b8] sm:$0xff]
  %v1062 = vld [vmem:[%s11 + $0x1c0] sm:$0xff]
  %v1063 = vld [vmem:[%s11 + $0x1c8] sm:$0xff]
  %v1064 = vld [vmem:[%s11 + $0x1d0] sm:$0xff]
  %v1065 = vld [vmem:[%s11 + $0x1d8] sm:$0xff]
  %v1066 = vld [vmem:[%s11 + $0x1e0] sm:$0xff]
  %v1067 = vld [vmem:[%s11 + $0x1e8] sm:$0xff]
  %v1068 = vld [vmem:[%s11 + $0x1f0] sm:$0xff]
  %v1069 = vld [vmem:[%s11 + $0x1f8] sm:$0xff]
  %v1070 = vld [vmem:[%s11 + $0x200] sm:$0xff]
  %v1071 = vld [vmem:[%s11 + $0x208] sm:$0xff]
  %v1072 = vld [vmem:[%s11 + $0x210] sm:$0xff]
  %v1073 = vld [vmem:[%s11 + $0x218] sm:$0xff]
  %v1074 = vld [vmem:[%s11 + $0x220] sm:$0xff]
  %v1075 = vld [vmem:[%s11 + $0x228] sm:$0xff]
  %v1076 = vld [vmem:[%s11 + $0x230] sm:$0xff]
  %v1077 = vld [vmem:[%s11 + $0x238] sm:$0xff]
  %v1078 = vld [vmem:[%s11 + $0x240] sm:$0xff]
  %v1079 = vld [vmem:[%s11 + $0x248] sm:$0xff]
  %v1080 = vld [vmem:[%s11 + $0x250] sm:$0xff]
  %v1081 = vld [vmem:[%s11 + $0x258] sm:$0xff]
  %v1082 = vld [vmem:[%s11 + $0x260] sm:$0xff]
  %v1083 = vld [vmem:[%s11 + $0x268] sm:$0xff]
  %v1084 = vld [vmem:[%s11 + $0x270] sm:$0xff]
  %v1085 = vld [vmem:[%s11 + $0x278] sm:$0xff]
  %v1086 = vld [vmem:[%s11 + $0x280] sm:$0xff]
  %v1087 = vld [vmem:[%s11 + $0x288] sm:$0xff]
  %v1088 = vld [vmem:[%s11 + $0x290] sm:$0xff]
  %v1089 = vld [vmem:[%s11 + $0x298] sm:$0xff]
  %v1090 = vld [vmem:[%s11 + $0x2a0] sm:$0xff]
  %v1091 = vld [vmem:[%s11 + $0x2a8] sm:$0xff]
  %v1092 = vld [vmem:[%s11 + $0x2b0] sm:$0xff]
  %v1093 = vld [vmem:[%s11 + $0x2b8] sm:$0xff]
  %v1094 = vld [vmem:[%s11 + $0x2c0] sm:$0xff]
  %v1095 = vld [vmem:[%s11 + $0x2c8] sm:$0xff]
  %v1096 = vld [vmem:[%s11 + $0x2d0] sm:$0xff]
  %v1097 = vld [vmem:[%s11 + $0x2d8] sm:$0xff]
  %v1098 = vld [vmem:[%s11 + $0x2e0] sm:$0xff]
  %v1099 = vld [vmem:[%s11 + $0x2e8] sm:$0xff]
  %v1100 = vld [vmem:[%s11 + $0x2f0] sm:$0xff]
  %v1101 = vld [vmem:[%s11 + $0x2f8] sm:$0xff]
  %v1102 = vld [vmem:[%s11 + $0x300] sm:$0xff]
  %v1103 = vld [vmem:[%s11 + $0x308] sm:$0xff]
  %v1104 = vld [vmem:[%s11 + $0x310] sm:$0xff]
  %v1105 = vld [vmem:[%s11 + $0x318] sm:$0xff]
  %v1106 = vld [vmem:[%s11 + $0x320] sm:$0xff]
  %v1107 = vld [vmem:[%s11 + $0x328] sm:$0xff]
  %v1108 = vld [vmem:[%s11 + $0x330] sm:$0xff]
  %v1109 = vld [vmem:[%s11 + $0x338] sm:$0xff]
  %v1110 = vld [vmem:[%s11 + $0x340] sm:$0xff]
  %v1111 = vld [vmem:[%s11 + $0x348] sm:$0xff]
  %v1112 = vld [vmem:[%s11 + $0x350] sm:$0xff]
  %v1113 = vld [vmem:[%s11 + $0x358] sm:$0xff]
  %v1114 = vld [vmem:[%s11 + $0x360] sm:$0xff]
  %v1115 = vld [vmem:[%s11 + $0x368] sm:$0xff]
  %v1116 = vld [vmem:[%s11 + $0x370] sm:$0xff]
  %v1117 = vld [vmem:[%s11 + $0x378] sm:$0xff]
  %v1118 = vld [vmem:[%s11 + $0x380] sm:$0xff]
  %v1119 = vld [vmem:[%s11 + $0x388] sm:$0xff]
  %v1120 = vld [vmem:[%s11 + $0x390] sm:$0xff]
  %v1121 = vld [vmem:[%s11 + $0x398] sm:$0xff]
  %v1122 = vld [vmem:[%s11 + $0x3a0] sm:$0xff]
  %v1123 = vld [vmem:[%s11 + $0x3a8] sm:$0xff]
  %v1124 = vld [vmem:[%s11 + $0x3b0] sm:$0xff]
  %v1125 = vld [vmem:[%s11 + $0x3b8] sm:$0xff]
  %v1126 = vld [vmem:[%s11 + $0x3c0] sm:$0xff]
  %v1127 = vld [vmem:[%s11 + $0x3c8] sm:$0xff]
  %v1128 = vld [vmem:[%s11 + $0x3d0] sm:$0xff]
  %v1129 = vld [vmem:[%s11 + $0x3d8] sm:$0xff]
  %v1130 = vld [vmem:[%s11 + $0x3e0] sm:$0xff]
  %v1131 = vld [vmem:[%s11 + $0x3e8] sm:$0xff]
  %v1132 = vld [vmem:[%s11 + $0x3f0] sm:$0xff]
  %v1133 = vld [vmem:[%s11 + $0x3f8] sm:$0xff]
  %v1134 = vld [vmem:[%s12] sm:$0x3]
  %v1136 = vperm.slane %v1134, 0
  %v1137 = vperm.slane %v1134, 1
  %v1268 = vunpack.c.l.b16 %v1006
  %v1269 = vunpack.c.h.b16 %v1006
  %v1270 = vunpack.c.l.b16 %v1007
  %v1271 = vunpack.c.h.b16 %v1007
  %v1272 = vunpack.c.l.b16 %v1008
  %v1273 = vunpack.c.h.b16 %v1008
  %v1274 = vunpack.c.l.b16 %v1009
  %v1275 = vunpack.c.h.b16 %v1009
  %v1276 = vunpack.c.l.b16 %v1010
  %v1277 = vunpack.c.h.b16 %v1010
  %v1278 = vunpack.c.l.b16 %v1011
  %v1279 = vunpack.c.h.b16 %v1011
  %v1280 = vunpack.c.l.b16 %v1012
  %v1281 = vunpack.c.h.b16 %v1012
  %v1282 = vunpack.c.l.b16 %v1013
  %v1283 = vunpack.c.h.b16 %v1013
  %v1284 = vunpack.c.l.b16 %v1014
  %v1285 = vunpack.c.h.b16 %v1014
  %v1286 = vunpack.c.l.b16 %v1015
  %v1287 = vunpack.c.h.b16 %v1015
  %v1288 = vunpack.c.l.b16 %v1016
  %v1289 = vunpack.c.h.b16 %v1016
  %v1290 = vunpack.c.l.b16 %v1017
  %v1291 = vunpack.c.h.b16 %v1017
  %v1292 = vunpack.c.l.b16 %v1018
  %v1293 = vunpack.c.h.b16 %v1018
  %v1294 = vunpack.c.l.b16 %v1019
  %v1295 = vunpack.c.h.b16 %v1019
  %v1296 = vunpack.c.l.b16 %v1020
  %v1297 = vunpack.c.h.b16 %v1020
  %v1298 = vunpack.c.l.b16 %v1021
  %v1299 = vunpack.c.h.b16 %v1021
  %v1300 = vunpack.c.l.b16 %v1022
  %v1301 = vunpack.c.h.b16 %v1022
  %v1302 = vunpack.c.l.b16 %v1023
  %v1303 = vunpack.c.h.b16 %v1023
  %v1304 = vunpack.c.l.b16 %v1024
  %v1305 = vunpack.c.h.b16 %v1024
  %v1306 = vunpack.c.l.b16 %v1025
  %v1307 = vunpack.c.h.b16 %v1025
  %v1308 = vunpack.c.l.b16 %v1026
  %v1309 = vunpack.c.h.b16 %v1026
  %v1310 = vunpack.c.l.b16 %v1027
  %v1311 = vunpack.c.h.b16 %v1027
  %v1312 = vunpack.c.l.b16 %v1028
  %v1313 = vunpack.c.h.b16 %v1028
  %v1314 = vunpack.c.l.b16 %v1029
  %v1315 = vunpack.c.h.b16 %v1029
  %v1316 = vunpack.c.l.b16 %v1030
  %v1317 = vunpack.c.h.b16 %v1030
  %v1318 = vunpack.c.l.b16 %v1031
  %v1319 = vunpack.c.h.b16 %v1031
  %v1320 = vunpack.c.l.b16 %v1032
  %v1321 = vunpack.c.h.b16 %v1032
  %v1322 = vunpack.c.l.b16 %v1033
  %v1323 = vunpack.c.h.b16 %v1033
  %v1324 = vunpack.c.l.b16 %v1034
  %v1325 = vunpack.c.h.b16 %v1034
  %v1326 = vunpack.c.l.b16 %v1035
  %v1327 = vunpack.c.h.b16 %v1035
  %v1328 = vunpack.c.l.b16 %v1036
  %v1329 = vunpack.c.h.b16 %v1036
  %v1330 = vunpack.c.l.b16 %v1037
  %v1331 = vunpack.c.h.b16 %v1037
  %v1332 = vunpack.c.l.b16 %v1038
  %v1333 = vunpack.c.h.b16 %v1038
  %v1334 = vunpack.c.l.b16 %v1039
  %v1335 = vunpack.c.h.b16 %v1039
  %v1336 = vunpack.c.l.b16 %v1040
  %v1337 = vunpack.c.h.b16 %v1040
  %v1338 = vunpack.c.l.b16 %v1041
  %v1339 = vunpack.c.h.b16 %v1041
  %v1340 = vunpack.c.l.b16 %v1042
  %v1341 = vunpack.c.h.b16 %v1042
  %v1342 = vunpack.c.l.b16 %v1043
  %v1343 = vunpack.c.h.b16 %v1043
  %v1344 = vunpack.c.l.b16 %v1044
  %v1345 = vunpack.c.h.b16 %v1044
  %v1346 = vunpack.c.l.b16 %v1045
  %v1347 = vunpack.c.h.b16 %v1045
  %v1348 = vunpack.c.l.b16 %v1046
  %v1349 = vunpack.c.h.b16 %v1046
  %v1350 = vunpack.c.l.b16 %v1047
  %v1351 = vunpack.c.h.b16 %v1047
  %v1352 = vunpack.c.l.b16 %v1048
  %v1353 = vunpack.c.h.b16 %v1048
  %v1354 = vunpack.c.l.b16 %v1049
  %v1355 = vunpack.c.h.b16 %v1049
  %v1356 = vunpack.c.l.b16 %v1050
  %v1357 = vunpack.c.h.b16 %v1050
  %v1358 = vunpack.c.l.b16 %v1051
  %v1359 = vunpack.c.h.b16 %v1051
  %v1360 = vunpack.c.l.b16 %v1052
  %v1361 = vunpack.c.h.b16 %v1052
  %v1362 = vunpack.c.l.b16 %v1053
  %v1363 = vunpack.c.h.b16 %v1053
  %v1364 = vunpack.c.l.b16 %v1054
  %v1365 = vunpack.c.h.b16 %v1054
  %v1366 = vunpack.c.l.b16 %v1055
  %v1367 = vunpack.c.h.b16 %v1055
  %v1368 = vunpack.c.l.b16 %v1056
  %v1369 = vunpack.c.h.b16 %v1056
  %v1370 = vunpack.c.l.b16 %v1057
  %v1371 = vunpack.c.h.b16 %v1057
  %v1372 = vunpack.c.l.b16 %v1058
  %v1373 = vunpack.c.h.b16 %v1058
  %v1374 = vunpack.c.l.b16 %v1059
  %v1375 = vunpack.c.h.b16 %v1059
  %v1376 = vunpack.c.l.b16 %v1060
  %v1377 = vunpack.c.h.b16 %v1060
  %v1378 = vunpack.c.l.b16 %v1061
  %v1379 = vunpack.c.h.b16 %v1061
  %v1380 = vunpack.c.l.b16 %v1062
  %v1381 = vunpack.c.h.b16 %v1062
  %v1382 = vunpack.c.l.b16 %v1063
  %v1383 = vunpack.c.h.b16 %v1063
  %v1384 = vunpack.c.l.b16 %v1064
  %v1385 = vunpack.c.h.b16 %v1064
  %v1386 = vunpack.c.l.b16 %v1065
  %v1387 = vunpack.c.h.b16 %v1065
  %v1388 = vunpack.c.l.b16 %v1066
  %v1389 = vunpack.c.h.b16 %v1066
  %v1390 = vunpack.c.l.b16 %v1067
  %v1391 = vunpack.c.h.b16 %v1067
  %v1392 = vunpack.c.l.b16 %v1068
  %v1393 = vunpack.c.h.b16 %v1068
  %v1394 = vunpack.c.l.b16 %v1069
  %v1395 = vunpack.c.h.b16 %v1069
  %v1396 = vunpack.c.l.b16 %v1070
  %v1397 = vunpack.c.h.b16 %v1070
  %v1398 = vunpack.c.l.b16 %v1071
  %v1399 = vunpack.c.h.b16 %v1071
  %v1400 = vunpack.c.l.b16 %v1072
  %v1401 = vunpack.c.h.b16 %v1072
  %v1402 = vunpack.c.l.b16 %v1073
  %v1403 = vunpack.c.h.b16 %v1073
  %v1404 = vunpack.c.l.b16 %v1074
  %v1405 = vunpack.c.h.b16 %v1074
  %v1406 = vunpack.c.l.b16 %v1075
  %v1407 = vunpack.c.h.b16 %v1075
  %v1408 = vunpack.c.l.b16 %v1076
  %v1409 = vunpack.c.h.b16 %v1076
  %v1410 = vunpack.c.l.b16 %v1077
  %v1411 = vunpack.c.h.b16 %v1077
  %v1412 = vunpack.c.l.b16 %v1078
  %v1413 = vunpack.c.h.b16 %v1078
  %v1414 = vunpack.c.l.b16 %v1079
  %v1415 = vunpack.c.h.b16 %v1079
  %v1416 = vunpack.c.l.b16 %v1080
  %v1417 = vunpack.c.h.b16 %v1080
  %v1418 = vunpack.c.l.b16 %v1081
  %v1419 = vunpack.c.h.b16 %v1081
  %v1420 = vunpack.c.l.b16 %v1082
  %v1421 = vunpack.c.h.b16 %v1082
  %v1422 = vunpack.c.l.b16 %v1083
  %v1423 = vunpack.c.h.b16 %v1083
  %v1424 = vunpack.c.l.b16 %v1084
  %v1425 = vunpack.c.h.b16 %v1084
  %v1426 = vunpack.c.l.b16 %v1085
  %v1427 = vunpack.c.h.b16 %v1085
  %v1428 = vunpack.c.l.b16 %v1086
  %v1429 = vunpack.c.h.b16 %v1086
  %v1430 = vunpack.c.l.b16 %v1087
  %v1431 = vunpack.c.h.b16 %v1087
  %v1432 = vunpack.c.l.b16 %v1088
  %v1433 = vunpack.c.h.b16 %v1088
  %v1434 = vunpack.c.l.b16 %v1089
  %v1435 = vunpack.c.h.b16 %v1089
  %v1436 = vunpack.c.l.b16 %v1090
  %v1437 = vunpack.c.h.b16 %v1090
  %v1438 = vunpack.c.l.b16 %v1091
  %v1439 = vunpack.c.h.b16 %v1091
  %v1440 = vunpack.c.l.b16 %v1092
  %v1441 = vunpack.c.h.b16 %v1092
  %v1442 = vunpack.c.l.b16 %v1093
  %v1443 = vunpack.c.h.b16 %v1093
  %v1444 = vunpack.c.l.b16 %v1094
  %v1445 = vunpack.c.h.b16 %v1094
  %v1446 = vunpack.c.l.b16 %v1095
  %v1447 = vunpack.c.h.b16 %v1095
  %v1448 = vunpack.c.l.b16 %v1096
  %v1449 = vunpack.c.h.b16 %v1096
  %v1450 = vunpack.c.l.b16 %v1097
  %v1451 = vunpack.c.h.b16 %v1097
  %v1452 = vunpack.c.l.b16 %v1098
  %v1453 = vunpack.c.h.b16 %v1098
  %v1454 = vunpack.c.l.b16 %v1099
  %v1455 = vunpack.c.h.b16 %v1099
  %v1456 = vunpack.c.l.b16 %v1100
  %v1457 = vunpack.c.h.b16 %v1100
  %v1458 = vunpack.c.l.b16 %v1101
  %v1459 = vunpack.c.h.b16 %v1101
  %v1460 = vunpack.c.l.b16 %v1102
  %v1461 = vunpack.c.h.b16 %v1102
  %v1462 = vunpack.c.l.b16 %v1103
  %v1463 = vunpack.c.h.b16 %v1103
  %v1464 = vunpack.c.l.b16 %v1104
  %v1465 = vunpack.c.h.b16 %v1104
  %v1466 = vunpack.c.l.b16 %v1105
  %v1467 = vunpack.c.h.b16 %v1105
  %v1468 = vunpack.c.l.b16 %v1106
  %v1469 = vunpack.c.h.b16 %v1106
  %v1470 = vunpack.c.l.b16 %v1107
  %v1471 = vunpack.c.h.b16 %v1107
  %v1472 = vunpack.c.l.b16 %v1108
  %v1473 = vunpack.c.h.b16 %v1108
  %v1474 = vunpack.c.l.b16 %v1109
  %v1475 = vunpack.c.h.b16 %v1109
  %v1476 = vunpack.c.l.b16 %v1110
  %v1477 = vunpack.c.h.b16 %v1110
  %v1478 = vunpack.c.l.b16 %v1111
  %v1479 = vunpack.c.h.b16 %v1111
  %v1480 = vunpack.c.l.b16 %v1112
  %v1481 = vunpack.c.h.b16 %v1112
  %v1482 = vunpack.c.l.b16 %v1113
  %v1483 = vunpack.c.h.b16 %v1113
  %v1484 = vunpack.c.l.b16 %v1114
  %v1485 = vunpack.c.h.b16 %v1114
  %v1486 = vunpack.c.l.b16 %v1115
  %v1487 = vunpack.c.h.b16 %v1115
  %v1488 = vunpack.c.l.b16 %v1116
  %v1489 = vunpack.c.h.b16 %v1116
  %v1490 = vunpack.c.l.b16 %v1117
  %v1491 = vunpack.c.h.b16 %v1117
  %v1492 = vunpack.c.l.b16 %v1118
  %v1493 = vunpack.c.h.b16 %v1118
  %v1494 = vunpack.c.l.b16 %v1119
  %v1495 = vunpack.c.h.b16 %v1119
  %v1496 = vunpack.c.l.b16 %v1120
  %v1497 = vunpack.c.h.b16 %v1120
  %v1498 = vunpack.c.l.b16 %v1121
  %v1499 = vunpack.c.h.b16 %v1121
  %v1500 = vunpack.c.l.b16 %v1122
  %v1501 = vunpack.c.h.b16 %v1122
  %v1502 = vunpack.c.l.b16 %v1123
  %v1503 = vunpack.c.h.b16 %v1123
  %v1504 = vunpack.c.l.b16 %v1124
  %v1505 = vunpack.c.h.b16 %v1124
  %v1506 = vunpack.c.l.b16 %v1125
  %v1507 = vunpack.c.h.b16 %v1125
  %v1508 = vunpack.c.l.b16 %v1126
  %v1509 = vunpack.c.h.b16 %v1126
  %v1510 = vunpack.c.l.b16 %v1127
  %v1511 = vunpack.c.h.b16 %v1127
  %v1512 = vunpack.c.l.b16 %v1128
  %v1513 = vunpack.c.h.b16 %v1128
  %v1514 = vunpack.c.l.b16 %v1129
  %v1515 = vunpack.c.h.b16 %v1129
  %v1516 = vunpack.c.l.b16 %v1130
  %v1517 = vunpack.c.h.b16 %v1130
  %v1518 = vunpack.c.l.b16 %v1131
  %v1519 = vunpack.c.h.b16 %v1131
  %v1520 = vunpack.c.l.b16 %v1132
  %v1521 = vunpack.c.h.b16 %v1132
  %v1522 = vunpack.c.l.b16 %v1133
  %v1523 = vunpack.c.h.b16 %v1133
  %v1524 = vpack.c.b16 %v1270, %v1268
  %v1525 = vpack.c.b16 %v1271, %v1269
  %v1526 = vpack.c.b16 %v1274, %v1272
  %v1527 = vpack.c.b16 %v1275, %v1273
  %v1528 = vpack.c.b16 %v1278, %v1276
  %v1529 = vpack.c.b16 %v1279, %v1277
  %v1530 = vpack.c.b16 %v1282, %v1280
  %v1531 = vpack.c.b16 %v1283, %v1281
  %v1532 = vpack.c.b16 %v1286, %v1284
  %v1533 = vpack.c.b16 %v1287, %v1285
  %v1534 = vpack.c.b16 %v1290, %v1288
  %v1535 = vpack.c.b16 %v1291, %v1289
  %v1536 = vpack.c.b16 %v1294, %v1292
  %v1537 = vpack.c.b16 %v1295, %v1293
  %v1538 = vpack.c.b16 %v1298, %v1296
  %v1539 = vpack.c.b16 %v1299, %v1297
  %v1540 = vpack.c.b16 %v1302, %v1300
  %v1541 = vpack.c.b16 %v1303, %v1301
  %v1542 = vpack.c.b16 %v1306, %v1304
  %v1543 = vpack.c.b16 %v1307, %v1305
  %v1544 = vpack.c.b16 %v1310, %v1308
  %v1545 = vpack.c.b16 %v1311, %v1309
  %v1546 = vpack.c.b16 %v1314, %v1312
  %v1547 = vpack.c.b16 %v1315, %v1313
  %v1548 = vpack.c.b16 %v1318, %v1316
  %v1549 = vpack.c.b16 %v1319, %v1317
  %v1550 = vpack.c.b16 %v1322, %v1320
  %v1551 = vpack.c.b16 %v1323, %v1321
  %v1552 = vpack.c.b16 %v1326, %v1324
  %v1553 = vpack.c.b16 %v1327, %v1325
  %v1554 = vpack.c.b16 %v1330, %v1328
  %v1555 = vpack.c.b16 %v1331, %v1329
  %v1556 = vpack.c.b16 %v1334, %v1332
  %v1557 = vpack.c.b16 %v1335, %v1333
  %v1558 = vpack.c.b16 %v1338, %v1336
  %v1559 = vpack.c.b16 %v1339, %v1337
  %v1560 = vpack.c.b16 %v1342, %v1340
  %v1561 = vpack.c.b16 %v1343, %v1341
  %v1562 = vpack.c.b16 %v1346, %v1344
  %v1563 = vpack.c.b16 %v1347, %v1345
  %v1564 = vpack.c.b16 %v1350, %v1348
  %v1565 = vpack.c.b16 %v1351, %v1349
  %v1566 = vpack.c.b16 %v1354, %v1352
  %v1567 = vpack.c.b16 %v1355, %v1353
  %v1568 = vpack.c.b16 %v1358, %v1356
  %v1569 = vpack.c.b16 %v1359, %v1357
  %v1570 = vpack.c.b16 %v1362, %v1360
  %v1571 = vpack.c.b16 %v1363, %v1361
  %v1572 = vpack.c.b16 %v1366, %v1364
  %v1573 = vpack.c.b16 %v1367, %v1365
  %v1574 = vpack.c.b16 %v1370, %v1368
  %v1575 = vpack.c.b16 %v1371, %v1369
  %v1576 = vpack.c.b16 %v1374, %v1372
  %v1577 = vpack.c.b16 %v1375, %v1373
  %v1578 = vpack.c.b16 %v1378, %v1376
  %v1579 = vpack.c.b16 %v1379, %v1377
  %v1580 = vpack.c.b16 %v1382, %v1380
  %v1581 = vpack.c.b16 %v1383, %v1381
  %v1582 = vpack.c.b16 %v1386, %v1384
  %v1583 = vpack.c.b16 %v1387, %v1385
  %v1584 = vpack.c.b16 %v1390, %v1388
  %v1585 = vpack.c.b16 %v1391, %v1389
  %v1586 = vpack.c.b16 %v1394, %v1392
  %v1587 = vpack.c.b16 %v1395, %v1393
  %v1588 = vpack.c.b16 %v1398, %v1396
  %v1589 = vpack.c.b16 %v1399, %v1397
  %v1590 = vpack.c.b16 %v1402, %v1400
  %v1591 = vpack.c.b16 %v1403, %v1401
  %v1592 = vpack.c.b16 %v1406, %v1404
  %v1593 = vpack.c.b16 %v1407, %v1405
  %v1594 = vpack.c.b16 %v1410, %v1408
  %v1595 = vpack.c.b16 %v1411, %v1409
  %v1596 = vpack.c.b16 %v1414, %v1412
  %v1597 = vpack.c.b16 %v1415, %v1413
  %v1598 = vpack.c.b16 %v1418, %v1416
  %v1599 = vpack.c.b16 %v1419, %v1417
  %v1600 = vpack.c.b16 %v1422, %v1420
  %v1601 = vpack.c.b16 %v1423, %v1421
  %v1602 = vpack.c.b16 %v1426, %v1424
  %v1603 = vpack.c.b16 %v1427, %v1425
  %v1604 = vpack.c.b16 %v1430, %v1428
  %v1605 = vpack.c.b16 %v1431, %v1429
  %v1606 = vpack.c.b16 %v1434, %v1432
  %v1607 = vpack.c.b16 %v1435, %v1433
  %v1608 = vpack.c.b16 %v1438, %v1436
  %v1609 = vpack.c.b16 %v1439, %v1437
  %v1610 = vpack.c.b16 %v1442, %v1440
  %v1611 = vpack.c.b16 %v1443, %v1441
  %v1612 = vpack.c.b16 %v1446, %v1444
  %v1613 = vpack.c.b16 %v1447, %v1445
  %v1614 = vpack.c.b16 %v1450, %v1448
  %v1615 = vpack.c.b16 %v1451, %v1449
  %v1616 = vpack.c.b16 %v1454, %v1452
  %v1617 = vpack.c.b16 %v1455, %v1453
  %v1618 = vpack.c.b16 %v1458, %v1456
  %v1619 = vpack.c.b16 %v1459, %v1457
  %v1620 = vpack.c.b16 %v1462, %v1460
  %v1621 = vpack.c.b16 %v1463, %v1461
  %v1622 = vpack.c.b16 %v1466, %v1464
  %v1623 = vpack.c.b16 %v1467, %v1465
  %v1624 = vpack.c.b16 %v1470, %v1468
  %v1625 = vpack.c.b16 %v1471, %v1469
  %v1626 = vpack.c.b16 %v1474, %v1472
  %v1627 = vpack.c.b16 %v1475, %v1473
  %v1628 = vpack.c.b16 %v1478, %v1476
  %v1629 = vpack.c.b16 %v1479, %v1477
  %v1630 = vpack.c.b16 %v1482, %v1480
  %v1631 = vpack.c.b16 %v1483, %v1481
  %v1632 = vpack.c.b16 %v1486, %v1484
  %v1633 = vpack.c.b16 %v1487, %v1485
  %v1634 = vpack.c.b16 %v1490, %v1488
  %v1635 = vpack.c.b16 %v1491, %v1489
  %v1636 = vpack.c.b16 %v1494, %v1492
  %v1637 = vpack.c.b16 %v1495, %v1493
  %v1638 = vpack.c.b16 %v1498, %v1496
  %v1639 = vpack.c.b16 %v1499, %v1497
  %v1640 = vpack.c.b16 %v1502, %v1500
  %v1641 = vpack.c.b16 %v1503, %v1501
  %v1642 = vpack.c.b16 %v1506, %v1504
  %v1643 = vpack.c.b16 %v1507, %v1505
  %v1644 = vpack.c.b16 %v1510, %v1508
  %v1645 = vpack.c.b16 %v1511, %v1509
  %v1646 = vpack.c.b16 %v1514, %v1512
  %v1647 = vpack.c.b16 %v1515, %v1513
  %v1648 = vpack.c.b16 %v1518, %v1516
  %v1649 = vpack.c.b16 %v1519, %v1517
  %v1650 = vpack.c.b16 %v1522, %v1520
  %v1651 = vpack.c.b16 %v1523, %v1521
  %1780 = vmatpush.bf16.msra.mxu0 %v1538
  %1781 = vmatpush.bf16.msra.mxu0 %v1536
  %1782 = vmatpush.bf16.msra.mxu0 %v1534
  %1783 = vmatpush.bf16.msra.mxu0 %v1532
  %1784 = vmatpush.bf16.msra.mxu0 %v1530
  %1785 = vmatpush.bf16.msra.mxu0 %v1528
  %1786 = vmatpush.bf16.msra.mxu0 %v1526
  %1787 = vmatpush.bf16.msra.mxu0 %v1524
  %1788 = vmatmul.bf16.gmra.mxu0 %v998
  %v1789 = vpop.f32.mrf.mxu0
  %v1790 = vadd.f32 %v1136, %v1789
  %v1791 = vpop.f32.mrf.mxu0
  %1792 = vdwg.mxu0
  %1793 = vmatpush.bf16.msra.mxu0 %v1554
  %1794 = vmatpush.bf16.msra.mxu0 %v1552
  %1795 = vmatpush.bf16.msra.mxu0 %v1550
  %1796 = vmatpush.bf16.msra.mxu0 %v1548
  %1797 = vmatpush.bf16.msra.mxu0 %v1546
  %1798 = vmatpush.bf16.msra.mxu0 %v1544
  %1799 = vmatpush.bf16.msra.mxu0 %v1542
  %1800 = vmatpush.bf16.msra.mxu0 %v1540
  %1801 = vmatmul.bf16.gmra.mxu0 %v999
  %v1802 = vpop.f32.mrf.mxu0
  %v1803 = vadd.f32 %v1790, %v1802
  %v1804 = vpop.f32.mrf.mxu0
  %1805 = vdwg.mxu0
  %1806 = vmatpush.bf16.msra.mxu0 %v1570
  %1807 = vmatpush.bf16.msra.mxu0 %v1568
  %1808 = vmatpush.bf16.msra.mxu0 %v1566
  %1809 = vmatpush.bf16.msra.mxu0 %v1564
  %1810 = vmatpush.bf16.msra.mxu0 %v1562
  %1811 = vmatpush.bf16.msra.mxu0 %v1560
  %1812 = vmatpush.bf16.msra.mxu0 %v1558
  %1813 = vmatpush.bf16.msra.mxu0 %v1556
  %1814 = vmatmul.bf16.gmra.mxu0 %v1000
  %v1815 = vpop.f32.mrf.mxu0
  %v1816 = vadd.f32 %v1803, %v1815
  %v1817 = vpop.f32.mrf.mxu0
  %1818 = vdwg.mxu0
  %1819 = vmatpush.bf16.msra.mxu0 %v1586
  %1820 = vmatpush.bf16.msra.mxu0 %v1584
  %1821 = vmatpush.bf16.msra.mxu0 %v1582
  %1822 = vmatpush.bf16.msra.mxu0 %v1580
  %1823 = vmatpush.bf16.msra.mxu0 %v1578
  %1824 = vmatpush.bf16.msra.mxu0 %v1576
  %1825 = vmatpush.bf16.msra.mxu0 %v1574
  %1826 = vmatpush.bf16.msra.mxu0 %v1572
  %1827 = vmatmul.bf16.gmra.mxu0 %v1001
  %v1828 = vpop.f32.mrf.mxu0
  %v1829 = vadd.f32 %v1816, %v1828
  %v1830 = vpop.f32.mrf.mxu0
  %1831 = vdwg.mxu0
  %1832 = vmatpush.bf16.msra.mxu0 %v1602
  %1833 = vmatpush.bf16.msra.mxu0 %v1600
  %1834 = vmatpush.bf16.msra.mxu0 %v1598
  %1835 = vmatpush.bf16.msra.mxu0 %v1596
  %1836 = vmatpush.bf16.msra.mxu0 %v1594
  %1837 = vmatpush.bf16.msra.mxu0 %v1592
  %1838 = vmatpush.bf16.msra.mxu0 %v1590
  %1839 = vmatpush.bf16.msra.mxu0 %v1588
  %1840 = vmatmul.bf16.gmra.mxu0 %v1002
  %v1841 = vpop.f32.mrf.mxu0
  %v1842 = vadd.f32 %v1829, %v1841
  %v1843 = vpop.f32.mrf.mxu0
  %1844 = vdwg.mxu0
  %1845 = vmatpush.bf16.msra.mxu0 %v1618
  %1846 = vmatpush.bf16.msra.mxu0 %v1616
  %1847 = vmatpush.bf16.msra.mxu0 %v1614
  %1848 = vmatpush.bf16.msra.mxu0 %v1612
  %1849 = vmatpush.bf16.msra.mxu0 %v1610
  %1850 = vmatpush.bf16.msra.mxu0 %v1608
  %1851 = vmatpush.bf16.msra.mxu0 %v1606
  %1852 = vmatpush.bf16.msra.mxu0 %v1604
  %1853 = vmatmul.bf16.gmra.mxu0 %v1003
  %v1854 = vpop.f32.mrf.mxu0
  %v1855 = vadd.f32 %v1842, %v1854
  %v1856 = vpop.f32.mrf.mxu0
  %1857 = vdwg.mxu0
  %1858 = vmatpush.bf16.msra.mxu0 %v1634
  %1859 = vmatpush.bf16.msra.mxu0 %v1632
  %1860 = vmatpush.bf16.msra.mxu0 %v1630
  %1861 = vmatpush.bf16.msra.mxu0 %v1628
  %1862 = vmatpush.bf16.msra.mxu0 %v1626
  %1863 = vmatpush.bf16.msra.mxu0 %v1624
  %1864 = vmatpush.bf16.msra.mxu0 %v1622
  %1865 = vmatpush.bf16.msra.mxu0 %v1620
  %1866 = vmatmul.bf16.gmra.mxu0 %v1004
  %v1867 = vpop.f32.mrf.mxu0
  %v1868 = vadd.f32 %v1855, %v1867
  %v1869 = vpop.f32.mrf.mxu0
  %1870 = vdwg.mxu0
  %1871 = vmatpush.bf16.msra.mxu0 %v1650
  %1872 = vmatpush.bf16.msra.mxu0 %v1648
  %1873 = vmatpush.bf16.msra.mxu0 %v1646
  %1874 = vmatpush.bf16.msra.mxu0 %v1644
  %1875 = vmatpush.bf16.msra.mxu0 %v1642
  %1876 = vmatpush.bf16.msra.mxu0 %v1640
  %1877 = vmatpush.bf16.msra.mxu0 %v1638
  %1878 = vmatpush.bf16.msra.mxu0 %v1636
  %1879 = vmatmul.bf16.gmra.mxu0 %v1005
  %v1880 = vpop.f32.mrf.mxu0
  %v1881 = vadd.f32 %v1868, %v1880
  %v1882 = vpop.f32.mrf.mxu0
  %1883 = vdwg.mxu0
  %1884 = vmatpush.bf16.msra.mxu0 %v1539
  %1885 = vmatpush.bf16.msra.mxu0 %v1537
  %1886 = vmatpush.bf16.msra.mxu0 %v1535
  %1887 = vmatpush.bf16.msra.mxu0 %v1533
  %1888 = vmatpush.bf16.msra.mxu0 %v1531
  %1889 = vmatpush.bf16.msra.mxu0 %v1529
  %1890 = vmatpush.bf16.msra.mxu0 %v1527
  %1891 = vmatpush.bf16.msra.mxu0 %v1525
  %1892 = vmatmul.bf16.gmra.mxu0 %v998
  %v1893 = vpop.f32.mrf.mxu0
  %v1894 = vadd.f32 %v1137, %v1893
  %v1895 = vpop.f32.mrf.mxu0
  %1896 = vdwg.mxu0
  %1897 = vmatpush.bf16.msra.mxu0 %v1555
  %1898 = vmatpush.bf16.msra.mxu0 %v1553
  %1899 = vmatpush.bf16.msra.mxu0 %v1551
  %1900 = vmatpush.bf16.msra.mxu0 %v1549
  %1901 = vmatpush.bf16.msra.mxu0 %v1547
  %1902 = vmatpush.bf16.msra.mxu0 %v1545
  %1903 = vmatpush.bf16.msra.mxu0 %v1543
  %1904 = vmatpush.bf16.msra.mxu0 %v1541
  %1905 = vmatmul.bf16.gmra.mxu0 %v999
  %v1906 = vpop.f32.mrf.mxu0
  %v1907 = vadd.f32 %v1894, %v1906
  %v1908 = vpop.f32.mrf.mxu0
  %1909 = vdwg.mxu0
  %1910 = vmatpush.bf16.msra.mxu0 %v1571
  %1911 = vmatpush.bf16.msra.mxu0 %v1569
  %1912 = vmatpush.bf16.msra.mxu0 %v1567
  %1913 = vmatpush.bf16.msra.mxu0 %v1565
  %1914 = vmatpush.bf16.msra.mxu0 %v1563
  %1915 = vmatpush.bf16.msra.mxu0 %v1561
  %1916 = vmatpush.bf16.msra.mxu0 %v1559
  %1917 = vmatpush.bf16.msra.mxu0 %v1557
  %1918 = vmatmul.bf16.gmra.mxu0 %v1000
  %v1919 = vpop.f32.mrf.mxu0
  %v1920 = vadd.f32 %v1907, %v1919
  %v1921 = vpop.f32.mrf.mxu0
  %1922 = vdwg.mxu0
  %1923 = vmatpush.bf16.msra.mxu0 %v1587
  %1924 = vmatpush.bf16.msra.mxu0 %v1585
  %1925 = vmatpush.bf16.msra.mxu0 %v1583
  %1926 = vmatpush.bf16.msra.mxu0 %v1581
  %1927 = vmatpush.bf16.msra.mxu0 %v1579
  %1928 = vmatpush.bf16.msra.mxu0 %v1577
  %1929 = vmatpush.bf16.msra.mxu0 %v1575
  %1930 = vmatpush.bf16.msra.mxu0 %v1573
  %1931 = vmatmul.bf16.gmra.mxu0 %v1001
  %v1932 = vpop.f32.mrf.mxu0
  %v1933 = vadd.f32 %v1920, %v1932
  %v1934 = vpop.f32.mrf.mxu0
  %1935 = vdwg.mxu0
  %1936 = vmatpush.bf16.msra.mxu0 %v1603
  %1937 = vmatpush.bf16.msra.mxu0 %v1601
  %1938 = vmatpush.bf16.msra.mxu0 %v1599
  %1939 = vmatpush.bf16.msra.mxu0 %v1597
  %1940 = vmatpush.bf16.msra.mxu0 %v1595
  %1941 = vmatpush.bf16.msra.mxu0 %v1593
  %1942 = vmatpush.bf16.msra.mxu0 %v1591
  %1943 = vmatpush.bf16.msra.mxu0 %v1589
  %1944 = vmatmul.bf16.gmra.mxu0 %v1002
  %v1945 = vpop.f32.mrf.mxu0
  %v1946 = vadd.f32 %v1933, %v1945
  %v1947 = vpop.f32.mrf.mxu0
  %1948 = vdwg.mxu0
  %1949 = vmatpush.bf16.msra.mxu0 %v1619
  %1950 = vmatpush.bf16.msra.mxu0 %v1617
  %1951 = vmatpush.bf16.msra.mxu0 %v1615
  %1952 = vmatpush.bf16.msra.mxu0 %v1613
  %1953 = vmatpush.bf16.msra.mxu0 %v1611
  %1954 = vmatpush.bf16.msra.mxu0 %v1609
  %1955 = vmatpush.bf16.msra.mxu0 %v1607
  %1956 = vmatpush.bf16.msra.mxu0 %v1605
  %1957 = vmatmul.bf16.gmra.mxu0 %v1003
  %v1958 = vpop.f32.mrf.mxu0
  %v1959 = vadd.f32 %v1946, %v1958
  %v1960 = vpop.f32.mrf.mxu0
  %1961 = vdwg.mxu0
  %1962 = vmatpush.bf16.msra.mxu0 %v1635
  %1963 = vmatpush.bf16.msra.mxu0 %v1633
  %1964 = vmatpush.bf16.msra.mxu0 %v1631
  %1965 = vmatpush.bf16.msra.mxu0 %v1629
  %1966 = vmatpush.bf16.msra.mxu0 %v1627
  %1967 = vmatpush.bf16.msra.mxu0 %v1625
  %1968 = vmatpush.bf16.msra.mxu0 %v1623
  %1969 = vmatpush.bf16.msra.mxu0 %v1621
  %1970 = vmatmul.bf16.gmra.mxu0 %v1004
  %v1971 = vpop.f32.mrf.mxu0
  %v1972 = vadd.f32 %v1959, %v1971
  %v1973 = vpop.f32.mrf.mxu0
  %1974 = vdwg.mxu0
  %1975 = vmatpush.bf16.msra.mxu0 %v1651
  %1976 = vmatpush.bf16.msra.mxu0 %v1649
  %1977 = vmatpush.bf16.msra.mxu0 %v1647
  %1978 = vmatpush.bf16.msra.mxu0 %v1645
  %1979 = vmatpush.bf16.msra.mxu0 %v1643
  %1980 = vmatpush.bf16.msra.mxu0 %v1641
  %1981 = vmatpush.bf16.msra.mxu0 %v1639
  %1982 = vmatpush.bf16.msra.mxu0 %v1637
  %1983 = vmatmul.bf16.gmra.mxu0 %v1005
  %v1984 = vpop.f32.mrf.mxu0
  %v1985 = vadd.f32 %v1972, %v1984
  %v1986 = vpop.f32.mrf.mxu0
  %1987 = vdwg.mxu0
  %vm1988 = vcmp.gt.f32.partialorder %v1881, 0.0
  %vm1989 = vcmp.gt.f32.partialorder %v1985, 0.0
  %v1990 = vmul.f32 %v1881, 0.01
  %v1991 = vmul.f32 %v1985, 0.01
  %v1992 = vsel %vm1988, %v1881, %v1990
  %v1993 = vsel %vm1989, %v1985, %v1991
  %v1994 = vpack.c.bf16 %v1992, %v1992
  %v1995 = vpack.c.bf16 %v1993, %v1993
  %v1996 = vld [vmem:[%s13] sm:$0xf]
  %v1997 = vld [vmem:[%s13 + $0x4] sm:$0xf]
  %v1998 = vld [vmem:[%s13 + $0x8] sm:$0xf]
  %v1999 = vld [vmem:[%s13 + $0xc] sm:$0xf]
  %v2000 = vld [vmem:[%s13 + $0x10] sm:$0xf]
  %v2001 = vld [vmem:[%s13 + $0x14] sm:$0xf]
  %v2002 = vld [vmem:[%s13 + $0x18] sm:$0xf]
  %v2003 = vld [vmem:[%s13 + $0x1c] sm:$0xf]
  %v2004 = vld [vmem:[%s13 + $0x20] sm:$0xf]
  %v2005 = vld [vmem:[%s13 + $0x24] sm:$0xf]
  %v2006 = vld [vmem:[%s13 + $0x28] sm:$0xf]
  %v2007 = vld [vmem:[%s13 + $0x2c] sm:$0xf]
  %v2008 = vld [vmem:[%s13 + $0x30] sm:$0xf]
  %v2009 = vld [vmem:[%s13 + $0x34] sm:$0xf]
  %v2010 = vld [vmem:[%s13 + $0x38] sm:$0xf]
  %v2011 = vld [vmem:[%s13 + $0x3c] sm:$0xf]
  %v2012 = vld [vmem:[%s13 + $0x40] sm:$0xf]
  %v2013 = vld [vmem:[%s13 + $0x44] sm:$0xf]
  %v2014 = vld [vmem:[%s13 + $0x48] sm:$0xf]
  %v2015 = vld [vmem:[%s13 + $0x4c] sm:$0xf]
  %v2016 = vld [vmem:[%s13 + $0x50] sm:$0xf]
  %v2017 = vld [vmem:[%s13 + $0x54] sm:$0xf]
  %v2018 = vld [vmem:[%s13 + $0x58] sm:$0xf]
  %v2019 = vld [vmem:[%s13 + $0x5c] sm:$0xf]
  %v2020 = vld [vmem:[%s13 + $0x60] sm:$0xf]
  %v2021 = vld [vmem:[%s13 + $0x64] sm:$0xf]
  %v2022 = vld [vmem:[%s13 + $0x68] sm:$0xf]
  %v2023 = vld [vmem:[%s13 + $0x6c] sm:$0xf]
  %v2024 = vld [vmem:[%s13 + $0x70] sm:$0xf]
  %v2025 = vld [vmem:[%s13 + $0x74] sm:$0xf]
  %v2026 = vld [vmem:[%s13 + $0x78] sm:$0xf]
  %v2027 = vld [vmem:[%s13 + $0x7c] sm:$0xf]
  %v2028 = vld [vmem:[%s14] sm:$0x1]
  %v2030 = vperm.slane %v2028, 0
  %v2064 = vunpack.c.l.b16 %v1996
  %v2065 = vunpack.c.l.b16 %v1997
  %v2066 = vunpack.c.l.b16 %v1998
  %v2067 = vunpack.c.l.b16 %v1999
  %v2068 = vunpack.c.l.b16 %v2000
  %v2069 = vunpack.c.l.b16 %v2001
  %v2070 = vunpack.c.l.b16 %v2002
  %v2071 = vunpack.c.l.b16 %v2003
  %v2072 = vunpack.c.l.b16 %v2004
  %v2073 = vunpack.c.l.b16 %v2005
  %v2074 = vunpack.c.l.b16 %v2006
  %v2075 = vunpack.c.l.b16 %v2007
  %v2076 = vunpack.c.l.b16 %v2008
  %v2077 = vunpack.c.l.b16 %v2009
  %v2078 = vunpack.c.l.b16 %v2010
  %v2079 = vunpack.c.l.b16 %v2011
  %v2080 = vunpack.c.l.b16 %v2012
  %v2081 = vunpack.c.l.b16 %v2013
  %v2082 = vunpack.c.l.b16 %v2014
  %v2083 = vunpack.c.l.b16 %v2015
  %v2084 = vunpack.c.l.b16 %v2016
  %v2085 = vunpack.c.l.b16 %v2017
  %v2086 = vunpack.c.l.b16 %v2018
  %v2087 = vunpack.c.l.b16 %v2019
  %v2088 = vunpack.c.l.b16 %v2020
  %v2089 = vunpack.c.l.b16 %v2021
  %v2090 = vunpack.c.l.b16 %v2022
  %v2091 = vunpack.c.l.b16 %v2023
  %v2092 = vunpack.c.l.b16 %v2024
  %v2093 = vunpack.c.l.b16 %v2025
  %v2094 = vunpack.c.l.b16 %v2026
  %v2095 = vunpack.c.l.b16 %v2027
  %v2096 = vpack.c.b16 %v2065, %v2064
  %v2097 = vpack.c.b16 %v2067, %v2066
  %v2098 = vpack.c.b16 %v2069, %v2068
  %v2099 = vpack.c.b16 %v2071, %v2070
  %v2100 = vpack.c.b16 %v2073, %v2072
  %v2101 = vpack.c.b16 %v2075, %v2074
  %v2102 = vpack.c.b16 %v2077, %v2076
  %v2103 = vpack.c.b16 %v2079, %v2078
  %v2104 = vpack.c.b16 %v2081, %v2080
  %v2105 = vpack.c.b16 %v2083, %v2082
  %v2106 = vpack.c.b16 %v2085, %v2084
  %v2107 = vpack.c.b16 %v2087, %v2086
  %v2108 = vpack.c.b16 %v2089, %v2088
  %v2109 = vpack.c.b16 %v2091, %v2090
  %v2110 = vpack.c.b16 %v2093, %v2092
  %v2111 = vpack.c.b16 %v2095, %v2094
  %2128 = vmatpush.bf16.msra.mxu0 %v2103
  %2129 = vmatpush.bf16.msra.mxu0 %v2102
  %2130 = vmatpush.bf16.msra.mxu0 %v2101
  %2131 = vmatpush.bf16.msra.mxu0 %v2100
  %2132 = vmatpush.bf16.msra.mxu0 %v2099
  %2133 = vmatpush.bf16.msra.mxu0 %v2098
  %2134 = vmatpush.bf16.msra.mxu0 %v2097
  %2135 = vmatpush.bf16.msra.mxu0 %v2096
  %2136 = vmatmul.bf16.gmra.mxu0 %v1994
  %v2137 = vpop.f32.mrf.mxu0
  %v2138 = vadd.f32 %v2030, %v2137
  %v2139 = vpop.f32.mrf.mxu0
  %2140 = vdwg.mxu0
  %2141 = vmatpush.bf16.msra.mxu0 %v2111
  %2142 = vmatpush.bf16.msra.mxu0 %v2110
  %2143 = vmatpush.bf16.msra.mxu0 %v2109
  %2144 = vmatpush.bf16.msra.mxu0 %v2108
  %2145 = vmatpush.bf16.msra.mxu0 %v2107
  %2146 = vmatpush.bf16.msra.mxu0 %v2106
  %2147 = vmatpush.bf16.msra.mxu0 %v2105
  %2148 = vmatpush.bf16.msra.mxu0 %v2104
  %2149 = vmatmul.bf16.gmra.mxu0 %v1995
  %v2150 = vpop.f32.mrf.mxu0
  %v2151 = vadd.f32 %v2138, %v2150
  %v2152 = vpop.f32.mrf.mxu0
  %2153 = vdwg.mxu0
  %v2155 = vrot.slane %v2151, 4
  %vm2157 = vcmask 27648
  %2158 = vst.msk [vmem:[%s15] sm:$0xf] %vm2157, %v2151
  %2159 = vst.msk [vmem:[%s15 + $0x4] sm:$0xf] %vm2157, %v2155
  // Predicated region
  $region62: #{frets_forward.1} parent=0 // pred_check
    _
  $region63: #{frets_forward.1} parent=0 // pred_check_branch
    %2161 = sbr.rel (0) target = $region65
  $region64: #{frets_forward.1} parent=0 // pred_region
    _
  $region65: #{frets_forward.1} parent=0 // pred_fallthru
    _
  // Predicated region
  $region66: #{frets_forward.1} parent=0 // pred_check
    _
  $region67: #{frets_forward.1} parent=0 // pred_check_branch
    %2163 = sbr.rel (0) target = $region69
  $region68: #{frets_forward.1} parent=0 // pred_region
    _
  $region69: #{frets_forward.1} parent=0 // pred_fallthru
    _

</llo_original>
